<compile_context>
chip_gen: v6e
topology: v6e:2x2x1
jax: 0.10.0
libtpu: 0.0.40
codegen_flags: <defaults>
</compile_context>

<pallas_src>
import functools

import jax
import jax.numpy as jnp
from jax import lax
from jax.experimental import pallas as pl
from jax.experimental.pallas import tpu as pltpu


_NEG_INF = float(jnp.finfo(jnp.float32).min) / 2.0   # reference only
_MASK_BIAS_MAG = 1.0e30                               # additive key-mask magnitude


def sanm_attention_kernel(
    x_ref, mcol_ref, mbias_ref,
    w_qkv_ref, b_qkv_ref, fsmn_w_ref, w_out_ref, b_out_ref,
    o_ref,
    q_hm_ref, k_hm_ref, v_hm_ref, fsmn_ref,
    *, n_head, d_k, kernel_size, left_pad, tq, use_bf16_exp,
):
    T = x_ref.shape[1]
    n_feat = n_head * d_k
    qi = pl.program_id(1)

    # ---- per-sequence preamble: QKV projection, head split, FSMN (qi == 0) ----
    @pl.when(qi == 0)
    def _():
        x = x_ref[0]          # (T, in_feat) bf16
        mcol = mcol_ref[0]    # (T, 1)       f32

        # linear_q_k_v: one wide bf16 MXU matmul, f32 accumulation.
        # (1/sqrt(d_k) is folded into the Q columns of w_qkv / b_qkv.)
        qkv = jnp.dot(x, w_qkv_ref[...], preferred_element_type=jnp.float32)
        qkv = qkv + b_qkv_ref[...]                    # (T, 3*n_feat) f32
        q = qkv[:, :n_feat]
        k = qkv[:, n_feat:2 * n_feat]
        v = qkv[:, 2 * n_feat:]
        vm = v * mcol                                  # masked values (T, n_feat)

        # Head-major bf16 scratches via one reshape + transpose
        # (no per-head slice/stack lane shuffles).
        def to_heads(z):
            return jnp.transpose(
                z.reshape(T, n_head, d_k), (1, 0, 2)).astype(jnp.bfloat16)

        q_hm_ref[...] = to_heads(q)
        k_hm_ref[...] = to_heads(k)
        # Pre-masked V: attn @ vm == (attn * key_mask) @ v, incl. all-masked rows,
        # so the (H,T,T) post-softmax mask multiply is dropped entirely.
        v_hm_ref[...] = to_heads(vm)

        # FSMN memory block: depthwise conv over time (groups = n_feat),
        # conv[t] += w[tap] * vm[t + tap - left_pad], zero outside [0, T).
        # XLU rolls + edge-validity multiplies (select fused into a multiply).
        tidx = lax.broadcasted_iota(jnp.int32, (T, 1), 0)
        acc = vm                                       # residual term
        for tap in range(kernel_size):                 # static, small (K ~ 11)
            shift = left_pad - tap                     # want vm[t - shift]
            amt = shift % T                            # non-negative static roll
            rolled = pltpu.roll(vm, amt, axis=0) if amt else vm
            valid = ((tidx >= shift) & (tidx < T + shift)).astype(jnp.float32)
            acc = acc + (rolled * fsmn_w_ref[tap:tap + 1, :]) * valid
        fsmn_ref[...] = acc * mcol                     # (conv + vm) * mask

    # ---- per-query-tile attention: scores are only (H, tq, T) -----------------
    q0 = pl.multiple_of(qi * tq, tq)
    qh = q_hm_ref[:, pl.ds(q0, tq), :]                 # (H, tq, d_k) bf16

    s = jnp.einsum("htd,hsd->hts", qh, k_hm_ref[...],
                   preferred_element_type=jnp.float32)  # (H, tq, T) f32
    s = s + mbias_ref[...]                              # additive key mask (1,1,T)

    s_max = jnp.max(s, axis=-1, keepdims=True)
    p = s - s_max
    if use_bf16_exp:
        # v6e/v7x bf16 EUP exp; clamp so the -1e30 bias stays finite in bf16.
        e = jnp.exp(jnp.maximum(p, -80.0).astype(jnp.bfloat16)).astype(jnp.float32)
    else:
        # v5e and older: no bf16 EUP — stay in f32.
        e = jnp.exp(p)
    denom = jnp.sum(e, axis=-1, keepdims=True)
    attn = (e * pl.reciprocal(denom, approx=True)).astype(jnp.bfloat16)

    ctx_h = jnp.einsum("hts,hsd->htd", attn, v_hm_ref[...],
                       preferred_element_type=jnp.float32)   # (H, tq, d_k) f32
    ctx = jnp.transpose(ctx_h, (1, 0, 2)).reshape(tq, n_feat).astype(jnp.bfloat16)

    att_out = jnp.dot(ctx, w_out_ref[...], preferred_element_type=jnp.float32)
    o_ref[0] = att_out + b_out_ref[...] + fsmn_ref[pl.ds(q0, tq), :]


def _device_kind():
    try:
        return jax.devices()[0].device_kind.lower()
    except Exception:
        return ""


def sanm_attention(x, mask, params, *, n_head, d_k, kernel_size, sanm_shift=0, tq=None):
    """x: (B, T, in_feat) f32, mask: (B, 1, T) f32 (1 = keep, 0 = padded)."""
    B, T, in_feat = x.shape
    n_feat = n_head * d_k

    left_pad = (kernel_size - 1) // 2
    if sanm_shift > 0:
        left_pad = left_pad + sanm_shift
    right_pad = kernel_size - 1 - left_pad
    assert right_pad >= 0, "sanm_shift too large for kernel_size (negative right pad)"

    # Query-tile size: per grid step the score tensor is (H, tq, T), so VMEM is
    # O(H*tq*T) even for long sequences.
    if tq is None:
        tq = min(T, 256)
    if T % tq != 0 or (tq % 8 != 0 and tq != T):
        tq = T
    num_q_tiles = T // tq

    # Generation-aware choices (bf16 exp only where the EUP supports it; VMEM
    # budget with headroom under each chip's physical capacity).
    kind = _device_kind()
    use_bf16_exp = ("v6" in kind) or ("v7" in kind)
    if "v7" in kind:
        vmem_limit = 44 * 1024 * 1024     # 64 MiB physical on v7x
    elif ("v5" in kind) or ("v6" in kind):
        vmem_limit = 96 * 1024 * 1024     # 128 MiB physical
    else:
        vmem_limit = 64 * 1024 * 1024

    mask_f = mask.astype(jnp.float32)
    mask_col = jnp.reshape(mask_f, (B, T, 1))
    # Additive key-mask bias: one add per score instead of compare + select.
    mask_bias = (jnp.reshape(mask_f, (B, 1, T)) - 1.0) * _MASK_BIAS_MAG

    # Fold 1/sqrt(d_k) into the Q columns of the QKV weights/bias (trace time, free).
    scale = float(d_k) ** -0.5
    col_scale = jnp.concatenate(
        [jnp.full((n_feat,), scale, jnp.float32), jnp.ones((2 * n_feat,), jnp.float32)])
    w_qkv = params["w_qkv"].astype(jnp.float32) * col_scale[None, :]
    b_qkv = params["b_qkv"].astype(jnp.float32) * col_scale[None, :]
    fsmn_w = params["fsmn_w"].astype(jnp.float32)
    b_out = params["b_out"].astype(jnp.float32)

    # bf16 inputs for every matmul (f32 accumulation in-kernel); f32 elsewhere.
    x_bf = x.astype(jnp.bfloat16)
    w_qkv_bf = w_qkv.astype(jnp.bfloat16)
    w_out_bf = params["w_out"].astype(jnp.bfloat16)

    kernel = functools.partial(
        sanm_attention_kernel,
        n_head=n_head, d_k=d_k, kernel_size=kernel_size, left_pad=left_pad,
        tq=tq, use_bf16_exp=use_bf16_exp,
    )

    const2d = lambda shape: pl.BlockSpec(shape, lambda b, q: (0, 0))

    return pl.pallas_call(
        kernel,
        out_shape=jax.ShapeDtypeStruct((B, T, n_feat), jnp.float32),
        grid_spec=pltpu.PrefetchScalarGridSpec(
            num_scalar_prefetch=0,
            grid=(B, num_q_tiles),
            in_specs=[
                pl.BlockSpec((1, T, in_feat), lambda b, q: (b, 0, 0)),  # x (bf16), qi-invariant
                pl.BlockSpec((1, T, 1), lambda b, q: (b, 0, 0)),        # mask_col
                pl.BlockSpec((1, 1, T), lambda b, q: (b, 0, 0)),        # additive key-mask bias
                const2d(w_qkv_bf.shape),                                # (in_feat, 3*n_feat) bf16
                const2d(b_qkv.shape),                                   # (1, 3*n_feat) f32
                const2d(fsmn_w.shape),                                  # (K, n_feat) f32
                const2d(w_out_bf.shape),                                # (n_feat, n_feat) bf16
                const2d(b_out.shape),                                   # (1, n_feat) f32
            ],
            out_specs=pl.BlockSpec((1, tq, n_feat), lambda b, q: (b, q, 0)),
            scratch_shapes=[
                pltpu.VMEM((n_head, T, d_k), jnp.bfloat16),   # Q head-major (scaled)
                pltpu.VMEM((n_head, T, d_k), jnp.bfloat16),   # K head-major
                pltpu.VMEM((n_head, T, d_k), jnp.bfloat16),   # masked V head-major
                pltpu.VMEM((T, n_feat), jnp.float32),         # FSMN residual (full T)
            ],
        ),
        compiler_params=pltpu.CompilerParams(
            # Query tiles share the per-sequence scratches -> "arbitrary";
            # batch is "parallel" (megacore).
            dimension_semantics=("parallel", "arbitrary"),
            vmem_limit_bytes=vmem_limit,
        ),
    )(x_bf, mask_col, mask_bias, w_qkv_bf, b_qkv, fsmn_w, w_out_bf, b_out)


def reference_sanm_attention(x, mask, params, *, n_head, d_k, kernel_size, sanm_shift=0):
    """Pure-JAX f32 reference mirroring the PyTorch forward (eval mode)."""
    B, T, _ = x.shape
    n_feat = n_head * d_k
    w_qkv, b_qkv = params["w_qkv"], params["b_qkv"]
    fsmn_w, w_out, b_out = params["fsmn_w"], params["w_out"], params["b_out"]

    qkv = x @ w_qkv + b_qkv
    q, k, v = qkv[..., :n_feat], qkv[..., n_feat:2 * n_feat], qkv[..., 2 * n_feat:]

    mcol = jnp.reshape(mask, (B, T, 1))
    vm = v * mcol
    left_pad = (kernel_size - 1) // 2 + (sanm_shift if sanm_shift > 0 else 0)
    right_pad = kernel_size - 1 - left_pad
    assert right_pad >= 0
    padded = jnp.pad(vm, ((0, 0), (left_pad, right_pad), (0, 0)))
    conv = sum(padded[:, tap:tap + T, :] * fsmn_w[tap][None, None, :]
               for tap in range(kernel_size))
    fsmn = (conv + vm) * mcol

    def split_heads(z):
        return jnp.transpose(jnp.reshape(z, (B, T, n_head, d_k)), (0, 2, 1, 3))

    qh = split_heads(q) * (d_k ** -0.5)
    kh = split_heads(k)
    vh = split_heads(v)
    scores = jnp.einsum("bhqd,bhkd->bhqk", qh, kh)
    key_masked = (jnp.reshape(mask, (B, 1, 1, T)) == 0.0)
    scores = jnp.where(key_masked, _NEG_INF, scores)
    attn = jax.nn.softmax(scores, axis=-1)
    attn = jnp.where(key_masked, 0.0, attn)
    ctx = jnp.einsum("bhqk,bhkd->bhqd", attn, vh)
    ctx = jnp.reshape(jnp.transpose(ctx, (0, 2, 1, 3)), (B, T, n_feat))
    return ctx @ w_out + b_out + fsmn


if __name__ == "__main__":
    # Small, module-consistent shapes; T=16 with tq=8 exercises the tiled path.
    B, T = 2, 16
    in_feat, n_feat = 32, 32
    n_head = 4
    d_k = n_feat // n_head
    kernel_size = 11
    sanm_shift = 0

    key = jax.random.PRNGKey(0)
    k_x, k_wqkv, k_bqkv, k_fsmn, k_wout, k_bout = jax.random.split(key, 6)

    x = jax.random.normal(k_x, (B, T, in_feat), dtype=jnp.float32)
    # mask: (B, 1, T); batch 1 has the last three frames padded out.
    mask = jnp.ones((B, 1, T), dtype=jnp.float32)
    mask = mask.at[1, 0, -3:].set(0.0)

    params = {
        # Stored transposed relative to torch.nn.Linear.weight so the kernel does x @ W.
        "w_qkv": jax.random.normal(k_wqkv, (in_feat, 3 * n_feat), jnp.float32) * 0.05,
        "b_qkv": jax.random.normal(k_bqkv, (1, 3 * n_feat), jnp.float32) * 0.05,
        # Depthwise Conv1d weight (n_feat, 1, K) stored as (K, n_feat).
        "fsmn_w": jax.random.normal(k_fsmn, (kernel_size, n_feat), jnp.float32) * 0.05,
        "w_out": jax.random.normal(k_wout, (n_feat, n_feat), jnp.float32) * 0.05,
        "b_out": jax.random.normal(k_bout, (1, n_feat), jnp.float32) * 0.05,
    }

    out = sanm_attention(x, mask, params, n_head=n_head, d_k=d_k,
                         kernel_size=kernel_size, sanm_shift=sanm_shift, tq=8)
    out = jax.block_until_ready(out)

    ref = reference_sanm_attention(x, mask, params, n_head=n_head, d_k=d_k,
                                   kernel_size=kernel_size, sanm_shift=sanm_shift)
    assert out.shape == (B, T, n_feat)
    # bf16 matmul inputs (f32 accumulation) + approx reciprocal (+ bf16 exp on
    # v6e/v7x) => looser tolerance vs the f32 reference.
    assert jnp.allclose(out, ref, atol=5e-2, rtol=5e-2), "mismatch vs JAX reference"

    print("KERNEL_OK")
</pallas_src>

<mosaic_0001>
module attributes {stable_mosaic.version = 11 : i64} {
  func.func @sanm_attention_kernel(%arg0: i32, %arg1: i32, %arg2: memref<1x16x32xbf16, #tpu.memory_space<vmem>>, %arg3: memref<1x16x1xf32, #tpu.memory_space<vmem>>, %arg4: memref<1x1x16xf32, #tpu.memory_space<vmem>>, %arg5: memref<32x96xbf16, #tpu.memory_space<vmem>>, %arg6: memref<1x96xf32, #tpu.memory_space<vmem>>, %arg7: memref<11x32xf32, #tpu.memory_space<vmem>>, %arg8: memref<32x32xbf16, #tpu.memory_space<vmem>>, %arg9: memref<1x32xf32, #tpu.memory_space<vmem>>, %arg10: memref<1x8x32xf32, #tpu.memory_space<vmem>>, %arg11: memref<4x16x8xbf16, #tpu.memory_space<vmem>>, %arg12: memref<4x16x8xbf16, #tpu.memory_space<vmem>>, %arg13: memref<4x16x8xbf16, #tpu.memory_space<vmem>>, %arg14: memref<16x32xf32, #tpu.memory_space<vmem>>) attributes {dimension_semantics = [#tpu.dimension_semantics<parallel>, #tpu.dimension_semantics<arbitrary>], iteration_bounds = array<i64: 2, 2>, scalar_prefetch = 0 : i64, scratch_operands = 4 : i64, tpu.core_type = #tpu.core_type<tc>, window_params = [{transform_indices = @transform_0, window_bounds = array<i64: 1, 16, 32>}, {transform_indices = @transform_1, window_bounds = array<i64: 1, 16, 1>}, {transform_indices = @transform_2, window_bounds = array<i64: 1, 1, 16>}, {pipeline_mode = #tpu.pipeline_mode<synchronous>, transform_indices = @transform_3, window_bounds = array<i64: 32, 96>}, {pipeline_mode = #tpu.pipeline_mode<synchronous>, transform_indices = @transform_4, window_bounds = array<i64: 1, 96>}, {pipeline_mode = #tpu.pipeline_mode<synchronous>, transform_indices = @transform_5, window_bounds = array<i64: 11, 32>}, {pipeline_mode = #tpu.pipeline_mode<synchronous>, transform_indices = @transform_6, window_bounds = array<i64: 32, 32>}, {pipeline_mode = #tpu.pipeline_mode<synchronous>, transform_indices = @transform_7, window_bounds = array<i64: 1, 32>}, {transform_indices = @transform_8, window_bounds = array<i64: 1, 8, 32>}]} {
    %c0_i32 = arith.constant 0 : i32
    %0 = arith.cmpi eq, %arg1, %c0_i32 : i32
    %1 = arith.extui %0 : i1 to i32
    %c0_i32_0 = arith.constant 0 : i32
    %2 = arith.cmpi ne, %1, %c0_i32_0 : i32
    scf.if %2 {
      %c0_23 = arith.constant 0 : index
      %c0_24 = arith.constant 0 : index
      %c0_25 = arith.constant 0 : index
      %39 = vector.load %arg2[%c0_23, %c0_24, %c0_25] : memref<1x16x32xbf16, #tpu.memory_space<vmem>>, vector<1x16x32xbf16>
      %40 = vector.shape_cast %39 : vector<1x16x32xbf16> to vector<16x32xbf16>
      %c0_26 = arith.constant 0 : index
      %c0_27 = arith.constant 0 : index
      %c0_28 = arith.constant 0 : index
      %41 = vector.load %arg3[%c0_26, %c0_27, %c0_28] : memref<1x16x1xf32, #tpu.memory_space<vmem>>, vector<1x16x1xf32>
      %42 = vector.shape_cast %41 : vector<1x16x1xf32> to vector<16x1xf32>
      %c0_29 = arith.constant 0 : index
      %c0_30 = arith.constant 0 : index
      %43 = vector.load %arg5[%c0_29, %c0_30] : memref<32x96xbf16, #tpu.memory_space<vmem>>, vector<32x96xbf16>
      %cst_31 = arith.constant dense<0.000000e+00> : vector<16x96xf32>
      %44 = tpu.matmul %40, %43, %cst_31 {dimension_numbers = #tpu.dot_dimension_numbers<[1], [0], [0], [1], [0, 0, 1, 1], [], []>} : vector<16x32xbf16>, vector<32x96xbf16>, vector<16x96xf32> -> vector<16x96xf32>
      %c0_32 = arith.constant 0 : index
      %c0_33 = arith.constant 0 : index
      %45 = vector.load %arg6[%c0_32, %c0_33] : memref<1x96xf32, #tpu.memory_space<vmem>>, vector<1x96xf32>
      %46 = vector.broadcast %45 : vector<1x96xf32> to vector<16x96xf32>
      %47 = arith.addf %44, %46 : vector<16x96xf32>
      %48 = vector.extract_strided_slice %47 {offsets = [0, 0], sizes = [16, 32], strides = [1, 1]} : vector<16x96xf32> to vector<16x32xf32>
      %49 = vector.extract_strided_slice %47 {offsets = [0, 32], sizes = [16, 32], strides = [1, 1]} : vector<16x96xf32> to vector<16x32xf32>
      %50 = vector.extract_strided_slice %47 {offsets = [0, 64], sizes = [16, 32], strides = [1, 1]} : vector<16x96xf32> to vector<16x32xf32>
      %51 = vector.broadcast %42 : vector<16x1xf32> to vector<16x32xf32>
      %52 = arith.mulf %50, %51 : vector<16x32xf32>
      %53 = vector.shape_cast %48 : vector<16x32xf32> to vector<16x4x8xf32>
      %54 = tpu.transpose %53, [1, 0, 2] : vector<16x4x8xf32> -> vector<4x16x8xf32>
      %55 = arith.truncf %54 : vector<4x16x8xf32> to vector<4x16x8xbf16>
      %c0_34 = arith.constant 0 : index
      %c0_35 = arith.constant 0 : index
      %c0_36 = arith.constant 0 : index
      %56 = vector.load %arg11[%c0_34, %c0_35, %c0_36] : memref<4x16x8xbf16, #tpu.memory_space<vmem>>, vector<4x16x8xbf16>
      tpu.vector_store %arg11[%c0_34, %c0_35, %c0_36], %55 {strides = array<i32>} : memref<4x16x8xbf16, #tpu.memory_space<vmem>>, vector<4x16x8xbf16>,
      %57 = vector.shape_cast %49 : vector<16x32xf32> to vector<16x4x8xf32>
      %58 = tpu.transpose %57, [1, 0, 2] : vector<16x4x8xf32> -> vector<4x16x8xf32>
      %59 = arith.truncf %58 : vector<4x16x8xf32> to vector<4x16x8xbf16>
      %c0_37 = arith.constant 0 : index
      %c0_38 = arith.constant 0 : index
      %c0_39 = arith.constant 0 : index
      %60 = vector.load %arg12[%c0_37, %c0_38, %c0_39] : memref<4x16x8xbf16, #tpu.memory_space<vmem>>, vector<4x16x8xbf16>
      tpu.vector_store %arg12[%c0_37, %c0_38, %c0_39], %59 {strides = array<i32>} : memref<4x16x8xbf16, #tpu.memory_space<vmem>>, vector<4x16x8xbf16>,
      %61 = vector.shape_cast %52 : vector<16x32xf32> to vector<16x4x8xf32>
      %62 = tpu.transpose %61, [1, 0, 2] : vector<16x4x8xf32> -> vector<4x16x8xf32>
      %63 = arith.truncf %62 : vector<4x16x8xf32> to vector<4x16x8xbf16>
      %c0_40 = arith.constant 0 : index
      %c0_41 = arith.constant 0 : index
      %c0_42 = arith.constant 0 : index
      %64 = vector.load %arg13[%c0_40, %c0_41, %c0_42] : memref<4x16x8xbf16, #tpu.memory_space<vmem>>, vector<4x16x8xbf16>
      tpu.vector_store %arg13[%c0_40, %c0_41, %c0_42], %63 {strides = array<i32>} : memref<4x16x8xbf16, #tpu.memory_space<vmem>>, vector<4x16x8xbf16>,
      %65 = tpu.iota {dimensions = array<i32: 0>} : vector<16x1xi32>
      %c5_i32 = arith.constant 5 : i32
      %66 = tpu.dynamic_rotate %52 by %c5_i32 dim 0 : vector<16x32xf32>, i32 -> vector<16x32xf32>
      %c5_i32_43 = arith.constant 5 : i32
      %67 = vector.broadcast %c5_i32_43 : i32 to vector<16x1xi32>
      %68 = arith.cmpi sge, %65, %67 : vector<16x1xi32>
      %c21_i32 = arith.constant 21 : i32
      %69 = vector.broadcast %c21_i32 : i32 to vector<16x1xi32>
      %70 = arith.cmpi slt, %65, %69 : vector<16x1xi32>
      %71 = arith.andi %68, %70 : vector<16x1xi1>
      %72 = arith.extui %71 : vector<16x1xi1> to vector<16x1xi32>
      %73 = arith.sitofp %72 : vector<16x1xi32> to vector<16x1xf32>
      %c0_44 = arith.constant 0 : index
      %c0_45 = arith.constant 0 : index
      %74 = vector.load %arg7[%c0_44, %c0_45] : memref<11x32xf32, #tpu.memory_space<vmem>>, vector<1x32xf32>
      %75 = vector.broadcast %74 : vector<1x32xf32> to vector<16x32xf32>
      %76 = arith.mulf %66, %75 : vector<16x32xf32>
      %77 = vector.broadcast %73 : vector<16x1xf32> to vector<16x32xf32>
      %78 = arith.mulf %76, %77 : vector<16x32xf32>
      %79 = arith.addf %52, %78 : vector<16x32xf32>
      %c4_i32 = arith.constant 4 : i32
      %80 = tpu.dynamic_rotate %52 by %c4_i32 dim 0 : vector<16x32xf32>, i32 -> vector<16x32xf32>
      %c4_i32_46 = arith.constant 4 : i32
      %81 = vector.broadcast %c4_i32_46 : i32 to vector<16x1xi32>
      %82 = arith.cmpi sge, %65, %81 : vector<16x1xi32>
      %c20_i32 = arith.constant 20 : i32
      %83 = vector.broadcast %c20_i32 : i32 to vector<16x1xi32>
      %84 = arith.cmpi slt, %65, %83 : vector<16x1xi32>
      %85 = arith.andi %82, %84 : vector<16x1xi1>
      %86 = arith.extui %85 : vector<16x1xi1> to vector<16x1xi32>
      %87 = arith.sitofp %86 : vector<16x1xi32> to vector<16x1xf32>
      %c1 = arith.constant 1 : index
      %c0_47 = arith.constant 0 : index
      %88 = vector.load %arg7[%c1, %c0_47] : memref<11x32xf32, #tpu.memory_space<vmem>>, vector<1x32xf32>
      %89 = vector.broadcast %88 : vector<1x32xf32> to vector<16x32xf32>
      %90 = arith.mulf %80, %89 : vector<16x32xf32>
      %91 = vector.broadcast %87 : vector<16x1xf32> to vector<16x32xf32>
      %92 = arith.mulf %90, %91 : vector<16x32xf32>
      %93 = arith.addf %79, %92 : vector<16x32xf32>
      %c3_i32 = arith.constant 3 : i32
      %94 = tpu.dynamic_rotate %52 by %c3_i32 dim 0 : vector<16x32xf32>, i32 -> vector<16x32xf32>
      %c3_i32_48 = arith.constant 3 : i32
      %95 = vector.broadcast %c3_i32_48 : i32 to vector<16x1xi32>
      %96 = arith.cmpi sge, %65, %95 : vector<16x1xi32>
      %c19_i32 = arith.constant 19 : i32
      %97 = vector.broadcast %c19_i32 : i32 to vector<16x1xi32>
      %98 = arith.cmpi slt, %65, %97 : vector<16x1xi32>
      %99 = arith.andi %96, %98 : vector<16x1xi1>
      %100 = arith.extui %99 : vector<16x1xi1> to vector<16x1xi32>
      %101 = arith.sitofp %100 : vector<16x1xi32> to vector<16x1xf32>
      %c2 = arith.constant 2 : index
      %c0_49 = arith.constant 0 : index
      %102 = vector.load %arg7[%c2, %c0_49] : memref<11x32xf32, #tpu.memory_space<vmem>>, vector<1x32xf32>
      %103 = vector.broadcast %102 : vector<1x32xf32> to vector<16x32xf32>
      %104 = arith.mulf %94, %103 : vector<16x32xf32>
      %105 = vector.broadcast %101 : vector<16x1xf32> to vector<16x32xf32>
      %106 = arith.mulf %104, %105 : vector<16x32xf32>
      %107 = arith.addf %93, %106 : vector<16x32xf32>
      %c2_i32 = arith.constant 2 : i32
      %108 = tpu.dynamic_rotate %52 by %c2_i32 dim 0 : vector<16x32xf32>, i32 -> vector<16x32xf32>
      %c2_i32_50 = arith.constant 2 : i32
      %109 = vector.broadcast %c2_i32_50 : i32 to vector<16x1xi32>
      %110 = arith.cmpi sge, %65, %109 : vector<16x1xi32>
      %c18_i32 = arith.constant 18 : i32
      %111 = vector.broadcast %c18_i32 : i32 to vector<16x1xi32>
      %112 = arith.cmpi slt, %65, %111 : vector<16x1xi32>
      %113 = arith.andi %110, %112 : vector<16x1xi1>
      %114 = arith.extui %113 : vector<16x1xi1> to vector<16x1xi32>
      %115 = arith.sitofp %114 : vector<16x1xi32> to vector<16x1xf32>
      %c3 = arith.constant 3 : index
      %c0_51 = arith.constant 0 : index
      %116 = vector.load %arg7[%c3, %c0_51] : memref<11x32xf32, #tpu.memory_space<vmem>>, vector<1x32xf32>
      %117 = vector.broadcast %116 : vector<1x32xf32> to vector<16x32xf32>
      %118 = arith.mulf %108, %117 : vector<16x32xf32>
      %119 = vector.broadcast %115 : vector<16x1xf32> to vector<16x32xf32>
      %120 = arith.mulf %118, %119 : vector<16x32xf32>
      %121 = arith.addf %107, %120 : vector<16x32xf32>
      %c1_i32 = arith.constant 1 : i32
      %122 = tpu.dynamic_rotate %52 by %c1_i32 dim 0 : vector<16x32xf32>, i32 -> vector<16x32xf32>
      %c1_i32_52 = arith.constant 1 : i32
      %123 = vector.broadcast %c1_i32_52 : i32 to vector<16x1xi32>
      %124 = arith.cmpi sge, %65, %123 : vector<16x1xi32>
      %c17_i32 = arith.constant 17 : i32
      %125 = vector.broadcast %c17_i32 : i32 to vector<16x1xi32>
      %126 = arith.cmpi slt, %65, %125 : vector<16x1xi32>
      %127 = arith.andi %124, %126 : vector<16x1xi1>
      %128 = arith.extui %127 : vector<16x1xi1> to vector<16x1xi32>
      %129 = arith.sitofp %128 : vector<16x1xi32> to vector<16x1xf32>
      %c4 = arith.constant 4 : index
      %c0_53 = arith.constant 0 : index
      %130 = vector.load %arg7[%c4, %c0_53] : memref<11x32xf32, #tpu.memory_space<vmem>>, vector<1x32xf32>
      %131 = vector.broadcast %130 : vector<1x32xf32> to vector<16x32xf32>
      %132 = arith.mulf %122, %131 : vector<16x32xf32>
      %133 = vector.broadcast %129 : vector<16x1xf32> to vector<16x32xf32>
      %134 = arith.mulf %132, %133 : vector<16x32xf32>
      %135 = arith.addf %121, %134 : vector<16x32xf32>
      %c0_i32_54 = arith.constant 0 : i32
      %136 = vector.broadcast %c0_i32_54 : i32 to vector<16x1xi32>
      %137 = arith.cmpi sge, %65, %136 : vector<16x1xi32>
      %c16_i32 = arith.constant 16 : i32
      %138 = vector.broadcast %c16_i32 : i32 to vector<16x1xi32>
      %139 = arith.cmpi slt, %65, %138 : vector<16x1xi32>
      %140 = arith.andi %137, %139 : vector<16x1xi1>
      %141 = arith.extui %140 : vector<16x1xi1> to vector<16x1xi32>
      %142 = arith.sitofp %141 : vector<16x1xi32> to vector<16x1xf32>
      %c5 = arith.constant 5 : index
      %c0_55 = arith.constant 0 : index
      %143 = vector.load %arg7[%c5, %c0_55] : memref<11x32xf32, #tpu.memory_space<vmem>>, vector<1x32xf32>
      %144 = vector.broadcast %143 : vector<1x32xf32> to vector<16x32xf32>
      %145 = arith.mulf %52, %144 : vector<16x32xf32>
      %146 = vector.broadcast %142 : vector<16x1xf32> to vector<16x32xf32>
      %147 = arith.mulf %145, %146 : vector<16x32xf32>
      %148 = arith.addf %135, %147 : vector<16x32xf32>
      %c15_i32 = arith.constant 15 : i32
      %149 = tpu.dynamic_rotate %52 by %c15_i32 dim 0 : vector<16x32xf32>, i32 -> vector<16x32xf32>
      %c-1_i32 = arith.constant -1 : i32
      %150 = vector.broadcast %c-1_i32 : i32 to vector<16x1xi32>
      %151 = arith.cmpi sge, %65, %150 : vector<16x1xi32>
      %c15_i32_56 = arith.constant 15 : i32
      %152 = vector.broadcast %c15_i32_56 : i32 to vector<16x1xi32>
      %153 = arith.cmpi slt, %65, %152 : vector<16x1xi32>
      %154 = arith.andi %151, %153 : vector<16x1xi1>
      %155 = arith.extui %154 : vector<16x1xi1> to vector<16x1xi32>
      %156 = arith.sitofp %155 : vector<16x1xi32> to vector<16x1xf32>
      %c6 = arith.constant 6 : index
      %c0_57 = arith.constant 0 : index
      %157 = vector.load %arg7[%c6, %c0_57] : memref<11x32xf32, #tpu.memory_space<vmem>>, vector<1x32xf32>
      %158 = vector.broadcast %157 : vector<1x32xf32> to vector<16x32xf32>
      %159 = arith.mulf %149, %158 : vector<16x32xf32>
      %160 = vector.broadcast %156 : vector<16x1xf32> to vector<16x32xf32>
      %161 = arith.mulf %159, %160 : vector<16x32xf32>
      %162 = arith.addf %148, %161 : vector<16x32xf32>
      %c14_i32 = arith.constant 14 : i32
      %163 = tpu.dynamic_rotate %52 by %c14_i32 dim 0 : vector<16x32xf32>, i32 -> vector<16x32xf32>
      %c-2_i32 = arith.constant -2 : i32
      %164 = vector.broadcast %c-2_i32 : i32 to vector<16x1xi32>
      %165 = arith.cmpi sge, %65, %164 : vector<16x1xi32>
      %c14_i32_58 = arith.constant 14 : i32
      %166 = vector.broadcast %c14_i32_58 : i32 to vector<16x1xi32>
      %167 = arith.cmpi slt, %65, %166 : vector<16x1xi32>
      %168 = arith.andi %165, %167 : vector<16x1xi1>
      %169 = arith.extui %168 : vector<16x1xi1> to vector<16x1xi32>
      %170 = arith.sitofp %169 : vector<16x1xi32> to vector<16x1xf32>
      %c7 = arith.constant 7 : index
      %c0_59 = arith.constant 0 : index
      %171 = vector.load %arg7[%c7, %c0_59] : memref<11x32xf32, #tpu.memory_space<vmem>>, vector<1x32xf32>
      %172 = vector.broadcast %171 : vector<1x32xf32> to vector<16x32xf32>
      %173 = arith.mulf %163, %172 : vector<16x32xf32>
      %174 = vector.broadcast %170 : vector<16x1xf32> to vector<16x32xf32>
      %175 = arith.mulf %173, %174 : vector<16x32xf32>
      %176 = arith.addf %162, %175 : vector<16x32xf32>
      %c13_i32 = arith.constant 13 : i32
      %177 = tpu.dynamic_rotate %52 by %c13_i32 dim 0 : vector<16x32xf32>, i32 -> vector<16x32xf32>
      %c-3_i32 = arith.constant -3 : i32
      %178 = vector.broadcast %c-3_i32 : i32 to vector<16x1xi32>
      %179 = arith.cmpi sge, %65, %178 : vector<16x1xi32>
      %c13_i32_60 = arith.constant 13 : i32
      %180 = vector.broadcast %c13_i32_60 : i32 to vector<16x1xi32>
      %181 = arith.cmpi slt, %65, %180 : vector<16x1xi32>
      %182 = arith.andi %179, %181 : vector<16x1xi1>
      %183 = arith.extui %182 : vector<16x1xi1> to vector<16x1xi32>
      %184 = arith.sitofp %183 : vector<16x1xi32> to vector<16x1xf32>
      %c8 = arith.constant 8 : index
      %c0_61 = arith.constant 0 : index
      %185 = vector.load %arg7[%c8, %c0_61] : memref<11x32xf32, #tpu.memory_space<vmem>>, vector<1x32xf32>
      %186 = vector.broadcast %185 : vector<1x32xf32> to vector<16x32xf32>
      %187 = arith.mulf %177, %186 : vector<16x32xf32>
      %188 = vector.broadcast %184 : vector<16x1xf32> to vector<16x32xf32>
      %189 = arith.mulf %187, %188 : vector<16x32xf32>
      %190 = arith.addf %176, %189 : vector<16x32xf32>
      %c12_i32 = arith.constant 12 : i32
      %191 = tpu.dynamic_rotate %52 by %c12_i32 dim 0 : vector<16x32xf32>, i32 -> vector<16x32xf32>
      %c-4_i32 = arith.constant -4 : i32
      %192 = vector.broadcast %c-4_i32 : i32 to vector<16x1xi32>
      %193 = arith.cmpi sge, %65, %192 : vector<16x1xi32>
      %c12_i32_62 = arith.constant 12 : i32
      %194 = vector.broadcast %c12_i32_62 : i32 to vector<16x1xi32>
      %195 = arith.cmpi slt, %65, %194 : vector<16x1xi32>
      %196 = arith.andi %193, %195 : vector<16x1xi1>
      %197 = arith.extui %196 : vector<16x1xi1> to vector<16x1xi32>
      %198 = arith.sitofp %197 : vector<16x1xi32> to vector<16x1xf32>
      %c9 = arith.constant 9 : index
      %c0_63 = arith.constant 0 : index
      %199 = vector.load %arg7[%c9, %c0_63] : memref<11x32xf32, #tpu.memory_space<vmem>>, vector<1x32xf32>
      %200 = vector.broadcast %199 : vector<1x32xf32> to vector<16x32xf32>
      %201 = arith.mulf %191, %200 : vector<16x32xf32>
      %202 = vector.broadcast %198 : vector<16x1xf32> to vector<16x32xf32>
      %203 = arith.mulf %201, %202 : vector<16x32xf32>
      %204 = arith.addf %190, %203 : vector<16x32xf32>
      %c11_i32 = arith.constant 11 : i32
      %205 = tpu.dynamic_rotate %52 by %c11_i32 dim 0 : vector<16x32xf32>, i32 -> vector<16x32xf32>
      %c-5_i32 = arith.constant -5 : i32
      %206 = vector.broadcast %c-5_i32 : i32 to vector<16x1xi32>
      %207 = arith.cmpi sge, %65, %206 : vector<16x1xi32>
      %c11_i32_64 = arith.constant 11 : i32
      %208 = vector.broadcast %c11_i32_64 : i32 to vector<16x1xi32>
      %209 = arith.cmpi slt, %65, %208 : vector<16x1xi32>
      %210 = arith.andi %207, %209 : vector<16x1xi1>
      %211 = arith.extui %210 : vector<16x1xi1> to vector<16x1xi32>
      %212 = arith.sitofp %211 : vector<16x1xi32> to vector<16x1xf32>
      %c10 = arith.constant 10 : index
      %c0_65 = arith.constant 0 : index
      %213 = vector.load %arg7[%c10, %c0_65] : memref<11x32xf32, #tpu.memory_space<vmem>>, vector<1x32xf32>
      %214 = vector.broadcast %213 : vector<1x32xf32> to vector<16x32xf32>
      %215 = arith.mulf %205, %214 : vector<16x32xf32>
      %216 = vector.broadcast %212 : vector<16x1xf32> to vector<16x32xf32>
      %217 = arith.mulf %215, %216 : vector<16x32xf32>
      %218 = arith.addf %204, %217 : vector<16x32xf32>
      %219 = vector.broadcast %42 : vector<16x1xf32> to vector<16x32xf32>
      %220 = arith.mulf %218, %219 : vector<16x32xf32>
      %c0_66 = arith.constant 0 : index
      %c0_67 = arith.constant 0 : index
      %221 = vector.load %arg14[%c0_66, %c0_67] : memref<16x32xf32, #tpu.memory_space<vmem>>, vector<16x32xf32>
      tpu.vector_store %arg14[%c0_66, %c0_67], %220 {strides = array<i32>} : memref<16x32xf32, #tpu.memory_space<vmem>>, vector<16x32xf32>,
    } else {
    }
    %c8_i32 = arith.constant 8 : i32
    %3 = arith.muli %arg1, %c8_i32 : i32
    %4 = tpu.assume_multiple %3, 8 : i32
    %c0 = arith.constant 0 : index
    %5 = arith.index_cast %4 : i32 to index
    %c0_1 = arith.constant 0 : index
    %6 = vector.load %arg11[%c0, %5, %c0_1] : memref<4x16x8xbf16, #tpu.memory_space<vmem>>, vector<4x8x8xbf16>
    %c0_2 = arith.constant 0 : index
    %c0_3 = arith.constant 0 : index
    %c0_4 = arith.constant 0 : index
    %7 = vector.load %arg12[%c0_2, %c0_3, %c0_4] : memref<4x16x8xbf16, #tpu.memory_space<vmem>>, vector<4x16x8xbf16>
    "tpu.trace_start"() <{level = 10 : i32, message = "htd,hsd->hts"}> : () -> ()
    %cst = arith.constant dense<0.000000e+00> : vector<4x8x16xf32>
    %8 = tpu.matmul %6, %7, %cst {dimension_numbers = #tpu.dot_dimension_numbers<[2], [2], [1], [1], [0, 0, 0, 1, 1, 1], [0], [0]>} : vector<4x8x8xbf16>, vector<4x16x8xbf16>, vector<4x8x16xf32> -> vector<4x8x16xf32>
    "tpu.trace_stop"() : () -> ()
    %c0_5 = arith.constant 0 : index
    %c0_6 = arith.constant 0 : index
    %c0_7 = arith.constant 0 : index
    %9 = vector.load %arg4[%c0_5, %c0_6, %c0_7] : memref<1x1x16xf32, #tpu.memory_space<vmem>>, vector<1x1x16xf32>
    %10 = vector.broadcast %9 : vector<1x1x16xf32> to vector<4x8x16xf32>
    %11 = arith.addf %8, %10 : vector<4x8x16xf32>
    %cst_8 = arith.constant dense<0xFF800000> : vector<4x8xf32>
    %12 = vector.multi_reduction <maximumf>, %11, %cst_8 [2] : vector<4x8x16xf32> to vector<4x8xf32>
    %13 = vector.shape_cast %12 : vector<4x8xf32> to vector<4x8x1xf32>
    %14 = vector.broadcast %13 : vector<4x8x1xf32> to vector<4x8x16xf32>
    %15 = arith.subf %11, %14 : vector<4x8x16xf32>
    %16 = math.exp %15 : vector<4x8x16xf32>
    %cst_9 = arith.constant dense<0.000000e+00> : vector<4x8xf32>
    %17 = vector.multi_reduction <add>, %16, %cst_9 [2] : vector<4x8x16xf32> to vector<4x8xf32>
    %18 = vector.shape_cast %17 : vector<4x8xf32> to vector<4x8x1xf32>
    %19 = tpu.reciprocal %18 {approx = true} : vector<4x8x1xf32> -> vector<4x8x1xf32>
    %20 = vector.broadcast %19 : vector<4x8x1xf32> to vector<4x8x16xf32>
    %21 = arith.mulf %16, %20 : vector<4x8x16xf32>
    %22 = arith.truncf %21 : vector<4x8x16xf32> to vector<4x8x16xbf16>
    %c0_10 = arith.constant 0 : index
    %c0_11 = arith.constant 0 : index
    %c0_12 = arith.constant 0 : index
    %23 = vector.load %arg13[%c0_10, %c0_11, %c0_12] : memref<4x16x8xbf16, #tpu.memory_space<vmem>>, vector<4x16x8xbf16>
    "tpu.trace_start"() <{level = 10 : i32, message = "hts,hsd->htd"}> : () -> ()
    %cst_13 = arith.constant dense<0.000000e+00> : vector<4x8x8xf32>
    %24 = tpu.matmul %22, %23, %cst_13 {dimension_numbers = #tpu.dot_dimension_numbers<[2], [1], [1], [2], [0, 0, 0, 1, 1, 2], [0], [0]>} : vector<4x8x16xbf16>, vector<4x16x8xbf16>, vector<4x8x8xf32> -> vector<4x8x8xf32>
    "tpu.trace_stop"() : () -> ()
    %25 = tpu.transpose %24, [1, 0, 2] : vector<4x8x8xf32> -> vector<8x4x8xf32>
    %26 = vector.shape_cast %25 : vector<8x4x8xf32> to vector<8x32xf32>
    %27 = arith.truncf %26 : vector<8x32xf32> to vector<8x32xbf16>
    %c0_14 = arith.constant 0 : index
    %c0_15 = arith.constant 0 : index
    %28 = vector.load %arg8[%c0_14, %c0_15] : memref<32x32xbf16, #tpu.memory_space<vmem>>, vector<32x32xbf16>
    %cst_16 = arith.constant dense<0.000000e+00> : vector<8x32xf32>
    %29 = tpu.matmul %27, %28, %cst_16 {dimension_numbers = #tpu.dot_dimension_numbers<[1], [0], [0], [1], [0, 0, 1, 1], [], []>} : vector<8x32xbf16>, vector<32x32xbf16>, vector<8x32xf32> -> vector<8x32xf32>
    %c0_17 = arith.constant 0 : index
    %c0_18 = arith.constant 0 : index
    %30 = vector.load %arg9[%c0_17, %c0_18] : memref<1x32xf32, #tpu.memory_space<vmem>>, vector<1x32xf32>
    %31 = vector.broadcast %30 : vector<1x32xf32> to vector<8x32xf32>
    %32 = arith.addf %29, %31 : vector<8x32xf32>
    %33 = arith.index_cast %4 : i32 to index
    %c0_19 = arith.constant 0 : index
    %34 = vector.load %arg14[%33, %c0_19] : memref<16x32xf32, #tpu.memory_space<vmem>>, vector<8x32xf32>
    %35 = arith.addf %32, %34 : vector<8x32xf32>
    %c0_20 = arith.constant 0 : index
    %c0_21 = arith.constant 0 : index
    %c0_22 = arith.constant 0 : index
    %36 = vector.load %arg10[%c0_20, %c0_21, %c0_22] : memref<1x8x32xf32, #tpu.memory_space<vmem>>, vector<1x8x32xf32>
    %37 = vector.shape_cast %36 : vector<1x8x32xf32> to vector<8x32xf32>
    %38 = vector.shape_cast %35 : vector<8x32xf32> to vector<1x8x32xf32>
    tpu.vector_store %arg10[%c0_20, %c0_21, %c0_22], %38 {strides = array<i32>} : memref<1x8x32xf32, #tpu.memory_space<vmem>>, vector<1x8x32xf32>,
    return
  }
  func.func @transform_0(%arg0: i32, %arg1: i32) -> (i32, i32, i32) {
    %c0_i32 = arith.constant 0 : i32
    %c0_i32_0 = arith.constant 0 : i32
    %c0_i32_1 = arith.constant 0 : i32
    return %arg0, %c0_i32, %c0_i32_0 : i32, i32, i32
  }
  func.func @transform_1(%arg0: i32, %arg1: i32) -> (i32, i32, i32) {
    %c0_i32 = arith.constant 0 : i32
    %c0_i32_0 = arith.constant 0 : i32
    %c0_i32_1 = arith.constant 0 : i32
    return %arg0, %c0_i32, %c0_i32_0 : i32, i32, i32
  }
  func.func @transform_2(%arg0: i32, %arg1: i32) -> (i32, i32, i32) {
    %c0_i32 = arith.constant 0 : i32
    %c0_i32_0 = arith.constant 0 : i32
    %c0_i32_1 = arith.constant 0 : i32
    return %arg0, %c0_i32, %c0_i32_0 : i32, i32, i32
  }
  func.func @transform_3(%arg0: i32, %arg1: i32) -> (i32, i32) {
    %c0_i32 = arith.constant 0 : i32
    %c0_i32_0 = arith.constant 0 : i32
    %c0_i32_1 = arith.constant 0 : i32
    return %c0_i32, %c0_i32_0 : i32, i32
  }
  func.func @transform_4(%arg0: i32, %arg1: i32) -> (i32, i32) {
    %c0_i32 = arith.constant 0 : i32
    %c0_i32_0 = arith.constant 0 : i32
    %c0_i32_1 = arith.constant 0 : i32
    return %c0_i32, %c0_i32_0 : i32, i32
  }
  func.func @transform_5(%arg0: i32, %arg1: i32) -> (i32, i32) {
    %c0_i32 = arith.constant 0 : i32
    %c0_i32_0 = arith.constant 0 : i32
    %c0_i32_1 = arith.constant 0 : i32
    return %c0_i32, %c0_i32_0 : i32, i32
  }
  func.func @transform_6(%arg0: i32, %arg1: i32) -> (i32, i32) {
    %c0_i32 = arith.constant 0 : i32
    %c0_i32_0 = arith.constant 0 : i32
    %c0_i32_1 = arith.constant 0 : i32
    return %c0_i32, %c0_i32_0 : i32, i32
  }
  func.func @transform_7(%arg0: i32, %arg1: i32) -> (i32, i32) {
    %c0_i32 = arith.constant 0 : i32
    %c0_i32_0 = arith.constant 0 : i32
    %c0_i32_1 = arith.constant 0 : i32
    return %c0_i32, %c0_i32_0 : i32, i32
  }
  func.func @transform_8(%arg0: i32, %arg1: i32) -> (i32, i32, i32) {
    %c0_i32 = arith.constant 0 : i32
    %c0_i32_0 = arith.constant 0 : i32
    return %arg0, %arg1, %c0_i32 : i32, i32, i32
  }
}

</mosaic_0001>

<llo_original>
// kernel: tpu_custom_call.1
$region0: #{tpu_custom_call.1}
  #allocation0 [shape = 'u32[]', space=smem, size = 0x4, offset = 0x4, fixed_abs, tag = 'smem constant byte address 0x4 - core index']
  #allocation1 [shape = 'u32[144,128]{1,0:T(1,128)}', space=vmem, size = 0x12000, scoped, tag = 'internal scratch']
  #allocation2 [shape = 'bf16[4,16,8]{2,1,0:T(8,128)(2,1)}', space=vmem, size = 0x4000, scoped, tag = 'scratch operand']
  #allocation3 [shape = 'bf16[4,16,8]{2,1,0:T(8,128)(2,1)}', space=vmem, size = 0x4000, scoped, tag = 'scratch operand']
  #allocation4 [shape = 'bf16[4,16,8]{2,1,0:T(8,128)(2,1)}', space=vmem, size = 0x4000, scoped, tag = 'scratch operand']
  #allocation5 [shape = 'f32[16,32]{1,0:T(8,128)}', space=vmem, size = 0x2000, scoped, tag = 'scratch operand']
  %s0 = inlined_call_operand.vmem [shape: bf16[2,16,32], index: 0, kind: input, shape index: {}]
  %s1 = inlined_call_operand.vmem [shape: f32[2,16,1], index: 1, kind: input, shape index: {}]
  %s2 = inlined_call_operand.vmem [shape: f32[2,1,16], index: 2, kind: input, shape index: {}]
  %s3 = inlined_call_operand.vmem [shape: bf16[32,96], index: 3, kind: input, shape index: {}]
  %s4 = inlined_call_operand.vmem [shape: f32[1,96], index: 4, kind: input, shape index: {}]
  %s5 = inlined_call_operand.hbm [shape: f32[11,32], index: 5, kind: input, shape index: {}]
  %s6 = inlined_call_operand.hbm [shape: bf16[32,32], index: 6, kind: input, shape index: {}]
  %s7 = inlined_call_operand.vmem [shape: f32[1,32], index: 7, kind: input, shape index: {}]
  %s8 = inlined_call_operand.hbm [shape: f32[2,16,32], index: 8, kind: output, shape index: {}]
  %s9 = sld [smem:[#allocation0]]
  $region77: #{tpu_custom_call.1} parent=0
    _
  %s11 = ssub.s32 1, %s9
  %s12 = scalar_select 0, %s11, %s9
  $region1: #{tpu_custom_call.1} parent=0
    #allocation6 [shape = 'u8[8192]{0}', space=vmem, size = 0x2000, scoped, tag = 'input window, operand 5, single buffered']
    #allocation7 [shape = 's32[2]{0}', space=sflag, size = 0x8, scoped, tag = 'scoped memory for tpu_custom_call.1']
    #allocation8 [shape = 's32[2]{0}', space=sflag, size = 0x8, scoped, tag = 'scoped memory for tpu_custom_call.1']
    #allocation9 [shape = 'u8[8192]{0}', space=vmem, size = 0x2000, scoped, tag = 'input window, operand 6, single buffered']
    #allocation10 [shape = 's32[1]{0}', space=sflag, size = 0x4, scoped, tag = 'scoped memory for tpu_custom_call.1']
    #allocation11 [shape = 'u8[8192]{0}', space=vmem, size = 0x2000, scoped, tag = 'output window, operand 0']
    %13 = vsyncpa [#allocation7], 0
    %14 = vsyncpa [#allocation10], 0
    %15 = vsyncpa [#allocation8], 0
    %s16 = scalar_lea.sflag [#allocation8], 1
    %17 = vsyncpa %s16, 0
    loop: start=0, step=1, limit=6
    $region2: #{tpu_custom_call.1} parent=1 // loop_pre_header
      _
    $region3: #{tpu_custom_call.1} parent=1 // loop_header
      %s19 = sphi 0, %s23
      %p20 = scmp.ge.s32.totalorder %s19, 6
      %s26 = sphi 0, %s38
      %s27 = sphi 0, %s34
      %s28 = sphi 0, %s26
      %s29 = sphi 0, %s27
      %s30 = sphi 0, %s28
      %s31 = sphi 0, %s29
      %s41 = sphi 0, %s43
      %s44 = sphi 0, %s41
      %s45 = sphi 0, %s44
      %s61 = sphi 0, %s45
      %s67 = sphi 0, %s69
      %s70 = sphi 0, %s67
      %s71 = sphi 0, %s70
      %s87 = sphi 0, %s71
      %s93 = sphi 0, %s95
      %s96 = sphi 0, %s93
      %s97 = sphi 0, %s96
      %s113 = sphi 0, %s97
      %s117 = sphi 0, %s117
      %s119 = sphi 0, %s117
      %s120 = sphi 0, %s119
      %s134 = sphi 0, %s120
      %s138 = sphi 0, %s138
      %s140 = sphi 0, %s138
      %s141 = sphi 0, %s140
      %s155 = sphi 0, %s141
      %s159 = sphi 0, %s159
      %s161 = sphi 0, %s159
      %s162 = sphi 0, %s161
      %s176 = sphi 0, %s162
      %s180 = sphi 0, %s180
      %s182 = sphi 0, %s180
      %s183 = sphi 0, %s182
      %s197 = sphi 0, %s183
      %s201 = sphi 0, %s201
      %s203 = sphi 0, %s201
      %s204 = sphi 0, %s203
      %s218 = sphi 0, %s204
      %s226 = sphi 0, %s228
      %s229 = sphi 0, %s226
      %s230 = sphi 0, %s229
      %s246 = sphi 0, %s230
    $region4: #{tpu_custom_call.1} parent=1 // loop_header_branch
      %22 = sbr.rel (%p20) target = $region8
    $region5: #{tpu_custom_call.1} parent=1 // loop_body
      %s24 = ssub.s32 %s19, 1
      %s25 = ssub.s32 %s19, 2
      %s32 = sadd.s32 1, %s27
      %p33 = scmp.ge.s32.totalorder %s32, 2
      %s34 = scalar_select %p33, 0, %s32
      %s35 = sadd.s32 1, %s26
      %s36 = scalar_select %p33, %s35, %s26
      %p37 = scmp.ge.s32.totalorder %s36, 2
      %s38 = scalar_select %p37, 0, %s36
      %s39 = ssub.s32 %s26, %s38
      %p40 = scmp.eq.s32.totalorder %s39, 0
      %s42 = sadd.s32 %s41, 1
      %s43 = scalar_select %p40, %s41, %s42
      %p46 = pneg %p40
      %p47 = scmp.eq.s32.totalorder %s19, 3
      %p48 = por %p46, %p47
      %p49 = scmp.ne.s32.totalorder %s41, %s44
      %p50 = scmp.eq.s32.totalorder %s19, 0
      %p51 = por %p49, %p50
      %p52 = scmp.ne.s32.totalorder %s41, %s44
      %p53 = scmp.eq.s32.totalorder %s24, 3
      %p54 = por %p52, %p53
      %p55 = scmp.ne.s32.totalorder %s44, %s45
      %p56 = scmp.eq.s32.totalorder %s24, 0
      %p57 = por %p55, %p56
      %p58 = scmp.ne.s32.totalorder %s44, %s45
      %p59 = scmp.eq.s32.totalorder %s25, 3
      %p60 = por %p58, %p59
      %p62 = scmp.ne.s32.totalorder %s45, %s61
      %p63 = scmp.eq.s32.totalorder %s25, 0
      %p64 = por %p62, %p63
      %s65 = ssub.s32 %s26, %s38
      %p66 = scmp.eq.s32.totalorder %s65, 0
      %s68 = sadd.s32 %s67, 1
      %s69 = scalar_select %p66, %s67, %s68
      %p72 = pneg %p66
      %p73 = scmp.eq.s32.totalorder %s19, 3
      %p74 = por %p72, %p73
      %p75 = scmp.ne.s32.totalorder %s67, %s70
      %p76 = scmp.eq.s32.totalorder %s19, 0
      %p77 = por %p75, %p76
      %p78 = scmp.ne.s32.totalorder %s67, %s70
      %p79 = scmp.eq.s32.totalorder %s24, 3
      %p80 = por %p78, %p79
      %p81 = scmp.ne.s32.totalorder %s70, %s71
      %p82 = scmp.eq.s32.totalorder %s24, 0
      %p83 = por %p81, %p82
      %p84 = scmp.ne.s32.totalorder %s70, %s71
      %p85 = scmp.eq.s32.totalorder %s25, 3
      %p86 = por %p84, %p85
      %p88 = scmp.ne.s32.totalorder %s71, %s87
      %p89 = scmp.eq.s32.totalorder %s25, 0
      %p90 = por %p88, %p89
      %s91 = ssub.s32 %s26, %s38
      %p92 = scmp.eq.s32.totalorder %s91, 0
      %s94 = sadd.s32 %s93, 1
      %s95 = scalar_select %p92, %s93, %s94
      %p98 = pneg %p92
      %p99 = scmp.eq.s32.totalorder %s19, 3
      %p100 = por %p98, %p99
      %p101 = scmp.ne.s32.totalorder %s93, %s96
      %p102 = scmp.eq.s32.totalorder %s19, 0
      %p103 = por %p101, %p102
      %p104 = scmp.ne.s32.totalorder %s93, %s96
      %p105 = scmp.eq.s32.totalorder %s24, 3
      %p106 = por %p104, %p105
      %p107 = scmp.ne.s32.totalorder %s96, %s97
      %p108 = scmp.eq.s32.totalorder %s24, 0
      %p109 = por %p107, %p108
      %p110 = scmp.ne.s32.totalorder %s96, %s97
      %p111 = scmp.eq.s32.totalorder %s25, 3
      %p112 = por %p110, %p111
      %p114 = scmp.ne.s32.totalorder %s97, %s113
      %p115 = scmp.eq.s32.totalorder %s25, 0
      %p116 = por %p114, %p115
      %s118 = sadd.s32 %s117, 1
      %p121 = scmp.eq.s32.totalorder %s19, 3
      %p122 = scmp.ne.s32.totalorder %s117, %s119
      %p123 = scmp.eq.s32.totalorder %s19, 0
      %p124 = por %p122, %p123
      %p125 = scmp.ne.s32.totalorder %s117, %s119
      %p126 = scmp.eq.s32.totalorder %s24, 3
      %p127 = por %p125, %p126
      %p128 = scmp.ne.s32.totalorder %s119, %s120
      %p129 = scmp.eq.s32.totalorder %s24, 0
      %p130 = por %p128, %p129
      %p131 = scmp.ne.s32.totalorder %s119, %s120
      %p132 = scmp.eq.s32.totalorder %s25, 3
      %p133 = por %p131, %p132
      %p135 = scmp.ne.s32.totalorder %s120, %s134
      %p136 = scmp.eq.s32.totalorder %s25, 0
      %p137 = por %p135, %p136
      %s139 = sadd.s32 %s138, 1
      %p142 = scmp.eq.s32.totalorder %s19, 3
      %p143 = scmp.ne.s32.totalorder %s138, %s140
      %p144 = scmp.eq.s32.totalorder %s19, 0
      %p145 = por %p143, %p144
      %p146 = scmp.ne.s32.totalorder %s138, %s140
      %p147 = scmp.eq.s32.totalorder %s24, 3
      %p148 = por %p146, %p147
      %p149 = scmp.ne.s32.totalorder %s140, %s141
      %p150 = scmp.eq.s32.totalorder %s24, 0
      %p151 = por %p149, %p150
      %p152 = scmp.ne.s32.totalorder %s140, %s141
      %p153 = scmp.eq.s32.totalorder %s25, 3
      %p154 = por %p152, %p153
      %p156 = scmp.ne.s32.totalorder %s141, %s155
      %p157 = scmp.eq.s32.totalorder %s25, 0
      %p158 = por %p156, %p157
      %s160 = sadd.s32 %s159, 1
      %p163 = scmp.eq.s32.totalorder %s19, 3
      %p164 = scmp.ne.s32.totalorder %s159, %s161
      %p165 = scmp.eq.s32.totalorder %s19, 0
      %p166 = por %p164, %p165
      %p167 = scmp.ne.s32.totalorder %s159, %s161
      %p168 = scmp.eq.s32.totalorder %s24, 3
      %p169 = por %p167, %p168
      %p170 = scmp.ne.s32.totalorder %s161, %s162
      %p171 = scmp.eq.s32.totalorder %s24, 0
      %p172 = por %p170, %p171
      %p173 = scmp.ne.s32.totalorder %s161, %s162
      %p174 = scmp.eq.s32.totalorder %s25, 3
      %p175 = por %p173, %p174
      %p177 = scmp.ne.s32.totalorder %s162, %s176
      %p178 = scmp.eq.s32.totalorder %s25, 0
      %p179 = por %p177, %p178
      %s181 = sadd.s32 %s180, 1
      %p184 = scmp.eq.s32.totalorder %s19, 3
      %p185 = scmp.ne.s32.totalorder %s180, %s182
      %p186 = scmp.eq.s32.totalorder %s19, 0
      %p187 = por %p185, %p186
      %p188 = scmp.ne.s32.totalorder %s180, %s182
      %p189 = scmp.eq.s32.totalorder %s24, 3
      %p190 = por %p188, %p189
      %p191 = scmp.ne.s32.totalorder %s182, %s183
      %p192 = scmp.eq.s32.totalorder %s24, 0
      %p193 = por %p191, %p192
      %p194 = scmp.ne.s32.totalorder %s182, %s183
      %p195 = scmp.eq.s32.totalorder %s25, 3
      %p196 = por %p194, %p195
      %p198 = scmp.ne.s32.totalorder %s183, %s197
      %p199 = scmp.eq.s32.totalorder %s25, 0
      %p200 = por %p198, %p199
      %s202 = sadd.s32 %s201, 1
      %p205 = scmp.eq.s32.totalorder %s19, 3
      %p206 = scmp.ne.s32.totalorder %s201, %s203
      %p207 = scmp.eq.s32.totalorder %s19, 0
      %p208 = por %p206, %p207
      %p209 = scmp.ne.s32.totalorder %s201, %s203
      %p210 = scmp.eq.s32.totalorder %s24, 3
      %p211 = por %p209, %p210
      %p212 = scmp.ne.s32.totalorder %s203, %s204
      %p213 = scmp.eq.s32.totalorder %s24, 0
      %p214 = por %p212, %p213
      %p215 = scmp.ne.s32.totalorder %s203, %s204
      %p216 = scmp.eq.s32.totalorder %s25, 3
      %p217 = por %p215, %p216
      %p219 = scmp.ne.s32.totalorder %s204, %s218
      %p220 = scmp.eq.s32.totalorder %s25, 0
      %p221 = por %p219, %p220
      %s222 = ssub.s32 %s26, %s38
      %s223 = ssub.s32 %s27, %s34
      %s224 = sor.u32 %s222, %s223
      %p225 = scmp.eq.s32.totalorder %s224, 0
      %s227 = sadd.s32 %s226, 1
      %s228 = scalar_select %p225, %s226, %s227
      %p231 = pneg %p225
      %p232 = scmp.eq.s32.totalorder %s19, 3
      %p233 = por %p231, %p232
      %p234 = scmp.ne.s32.totalorder %s226, %s229
      %p235 = scmp.eq.s32.totalorder %s19, 0
      %p236 = por %p234, %p235
      %p237 = scmp.ne.s32.totalorder %s226, %s229
      %p238 = scmp.eq.s32.totalorder %s24, 3
      %p239 = por %p237, %p238
      %p240 = scmp.ne.s32.totalorder %s229, %s230
      %p241 = scmp.eq.s32.totalorder %s24, 0
      %p242 = por %p240, %p241
      %p243 = scmp.ne.s32.totalorder %s229, %s230
      %p244 = scmp.eq.s32.totalorder %s25, 3
      %p245 = por %p243, %p244
      %p247 = scmp.ne.s32.totalorder %s230, %s246
      %p248 = scmp.eq.s32.totalorder %s25, 0
      %p249 = por %p247, %p248
      %p250 = scmp.le.s32.totalorder 1, %s19
      %p251 = scmp.lt.s32.totalorder %s19, 5
      %p252 = pnand %p250, %p251
      %p253 = pneg %p252
      // Predicated region
      $region9: #{tpu_custom_call.1} parent=5 // pred_check
        _
      $region10: #{tpu_custom_call.1} parent=5 // pred_check_branch
        %255 = sbr.rel (%p252) target = $region12
      $region11: #{tpu_custom_call.1} parent=5 // pred_region
        %s256 = ssub.s32 %s19, 1
        // Predicated region
        $region13: #{tpu_custom_call.1} parent=11 // pred_check
          %p257 = pneg %p130
        $region14: #{tpu_custom_call.1} parent=11 // pred_check_branch
          %259 = sbr.rel (%p257) target = $region16
        $region15: #{tpu_custom_call.1} parent=11 // pred_region
          _
        $region16: #{tpu_custom_call.1} parent=11 // pred_fallthru
          _
        // Predicated region
        $region17: #{tpu_custom_call.1} parent=11 // pred_check
          %p260 = pneg %p151
        $region18: #{tpu_custom_call.1} parent=11 // pred_check_branch
          %262 = sbr.rel (%p260) target = $region20
        $region19: #{tpu_custom_call.1} parent=11 // pred_region
          _
        $region20: #{tpu_custom_call.1} parent=11 // pred_fallthru
          _
        // Predicated region
        $region21: #{tpu_custom_call.1} parent=11 // pred_check
          %p263 = pneg %p172
        $region22: #{tpu_custom_call.1} parent=11 // pred_check_branch
          %265 = sbr.rel (%p263) target = $region24
        $region23: #{tpu_custom_call.1} parent=11 // pred_region
          %s267 = ssub.s32 256, 256
          %268 = vsyncadd [#allocation7], %s267
          %s269 = sshll.u32 [#allocation6], 4
          %s270 = int_to_ptr.vmem [resolvable:$true] %s269
          %275 = dma.hbm_to_vmem [thread:$0]  %s5, 256, %s270, [#allocation7], 128, 128, 8
        $region24: #{tpu_custom_call.1} parent=11 // pred_fallthru
          _
        // Predicated region
        $region25: #{tpu_custom_call.1} parent=11 // pred_check
          %p276 = pneg %p193
        $region26: #{tpu_custom_call.1} parent=11 // pred_check_branch
          %278 = sbr.rel (%p276) target = $region28
        $region27: #{tpu_custom_call.1} parent=11 // pred_region
          %s280 = ssub.s32 256, 256
          %281 = vsyncadd [#allocation10], %s280
          %s282 = sshll.u32 [#allocation9], 4
          %s283 = int_to_ptr.vmem [resolvable:$true] %s282
          %288 = dma.hbm_to_vmem [thread:$0]  %s6, 256, %s283, [#allocation10], 64, 64, 4
        $region28: #{tpu_custom_call.1} parent=11 // pred_fallthru
          _
        // Predicated region
        $region29: #{tpu_custom_call.1} parent=11 // pred_check
          %p289 = pneg %p214
        $region30: #{tpu_custom_call.1} parent=11 // pred_check_branch
          %291 = sbr.rel (%p289) target = $region32
        $region31: #{tpu_custom_call.1} parent=11 // pred_region
          _
        $region32: #{tpu_custom_call.1} parent=11 // pred_fallthru
          _
      $region12: #{tpu_custom_call.1} parent=5 // pred_fallthru
        _
      %p292 = scmp.lt.s32.totalorder %s19, 4
      // Predicated region
      $region33: #{tpu_custom_call.1} parent=5 // pred_check
        %p293 = pneg %p292
      $region34: #{tpu_custom_call.1} parent=5 // pred_check_branch
        %295 = sbr.rel (%p293) target = $region36
      $region35: #{tpu_custom_call.1} parent=5 // pred_region
        // Predicated region
        $region37: #{tpu_custom_call.1} parent=35 // pred_check
          %p296 = pneg %p51
        $region38: #{tpu_custom_call.1} parent=35 // pred_check_branch
          %298 = sbr.rel (%p296) target = $region40
        $region39: #{tpu_custom_call.1} parent=35 // pred_region
          %p299 = scmp.lt.s32.totalorder %s26, 1
          %s300 = scalar_select %p299, %s26, 1
          %s301 = smul.addr %s300, 2
          %s302 = smul.addr %s301, 4
          %s303 = scalar_lea.vmem %s0, %s302
        $region40: #{tpu_custom_call.1} parent=35 // pred_fallthru
          _
        // Predicated region
        $region41: #{tpu_custom_call.1} parent=35 // pred_check
          %p304 = pneg %p77
        $region42: #{tpu_custom_call.1} parent=35 // pred_check_branch
          %306 = sbr.rel (%p304) target = $region44
        $region43: #{tpu_custom_call.1} parent=35 // pred_region
          %p307 = scmp.lt.s32.totalorder %s26, 1
          %s308 = scalar_select %p307, %s26, 1
          %s309 = smul.addr %s308, 2
          %s310 = smul.addr %s309, 8
          %s311 = scalar_lea.vmem %s1, %s310
        $region44: #{tpu_custom_call.1} parent=35 // pred_fallthru
          _
        // Predicated region
        $region45: #{tpu_custom_call.1} parent=35 // pred_check
          %p312 = pneg %p103
        $region46: #{tpu_custom_call.1} parent=35 // pred_check_branch
          %314 = sbr.rel (%p312) target = $region48
        $region47: #{tpu_custom_call.1} parent=35 // pred_region
          %p315 = scmp.lt.s32.totalorder %s26, 1
          %s316 = scalar_select %p315, %s26, 1
          %s317 = scalar_lea.vmem %s2, %s316
        $region48: #{tpu_custom_call.1} parent=35 // pred_fallthru
          _
      $region36: #{tpu_custom_call.1} parent=5 // pred_fallthru
        _
      %p318 = scmp.le.s32.totalorder 1, %s19
      %p319 = scmp.lt.s32.totalorder %s19, 5
      %p320 = pnand %p318, %p319
      %p321 = pneg %p320
      // Predicated region
      $region49: #{tpu_custom_call.1} parent=5 // pred_check
        _
      $region50: #{tpu_custom_call.1} parent=5 // pred_check_branch
        %323 = sbr.rel (%p320) target = $region52
      $region51: #{tpu_custom_call.1} parent=5 // pred_region
        %s324 = ssub.s32 %s19, 1
        // Predicated region
        $region53: #{tpu_custom_call.1} parent=51 // pred_check
          %p325 = pneg %p172
        $region54: #{tpu_custom_call.1} parent=51 // pred_check_branch
          %327 = sbr.rel (%p325) target = $region56
        $region55: #{tpu_custom_call.1} parent=51 // pred_region
          %328 = dma.done [#allocation7], 256
        $region56: #{tpu_custom_call.1} parent=51 // pred_fallthru
          _
        // Predicated region
        $region57: #{tpu_custom_call.1} parent=51 // pred_check
          %p329 = pneg %p193
        $region58: #{tpu_custom_call.1} parent=51 // pred_check_branch
          %331 = sbr.rel (%p329) target = $region60
        $region59: #{tpu_custom_call.1} parent=51 // pred_region
          %332 = dma.done [#allocation10], 256
        $region60: #{tpu_custom_call.1} parent=51 // pred_fallthru
          _
        %p333 = scmp.lt.s32.totalorder %s28, 1
        %s334 = scalar_select %p333, %s28, 1
        %s335 = smul.addr %s334, 2
        %s336 = smul.addr %s335, 4
        %s337 = scalar_lea.vmem %s0, %s336
        %p338 = pneg %p57
        %p339 = pneg %p54
        %p340 = scmp.lt.s32.totalorder %s28, 1
        %s341 = scalar_select %p340, %s28, 1
        %s342 = smul.addr %s341, 2
        %s343 = smul.addr %s342, 8
        %s344 = scalar_lea.vmem %s1, %s343
        %p345 = pneg %p83
        %p346 = pneg %p80
        %p347 = scmp.lt.s32.totalorder %s28, 1
        %s348 = scalar_select %p347, %s28, 1
        %s349 = scalar_lea.vmem %s2, %s348
        %p350 = pneg %p109
        %p351 = pneg %p106
        %p352 = pneg %p130
        %p353 = pneg %p127
        %p354 = pneg %p151
        %p355 = pneg %p148
        %p356 = pneg %p172
        %p357 = pneg %p169
        %p358 = pneg %p193
        %p359 = pneg %p190
        %p360 = pneg %p214
        %p361 = pneg %p211
        %p362 = pneg %p242
        %p363 = pneg %p239
        %s364 = sand.u32 %s229, 1
        %s365 = scalar_lea.sflag [#allocation8], %s364
        %s366 = sand.u32 %s229, 1
        %s367 = smul.addr %s366, 8
        %s368 = scalar_lea.vmem [#allocation11], %s367
        %p369 = scmp.lt.s32.totalorder %s28, 1
        %s370 = scalar_select %p369, %s28, 1
        %s371 = smul.addr %s370, 2
        %s372 = smul.addr %s371, 4
        %s373 = scalar_lea.vmem %s0, %s372
        %p374 = scmp.lt.s32.totalorder %s28, 1
        %s375 = scalar_select %p374, %s28, 1
        %s376 = smul.addr %s375, 2
        %s377 = smul.addr %s376, 8
        %s378 = scalar_lea.vmem %s1, %s377
        %p379 = scmp.lt.s32.totalorder %s28, 1
        %s380 = scalar_select %p379, %s28, 1
        %s381 = scalar_lea.vmem %s2, %s380
        %p383 = scmp.eq.s32.totalorder %s29, 0
        // Predicated region
        $region61: #{tpu_custom_call.1} parent=51 // pred_check
          %p384 = pneg %p383
        $region62: #{tpu_custom_call.1} parent=51 // pred_check_branch
          %386 = sbr.rel (%p384) target = $region64
        $region63: #{tpu_custom_call.1} parent=51 // pred_region
          %v387 = vld [vmem:[%s373] sm:$0xf]
          %v388 = vld [vmem:[%s373 + $0x4] sm:$0xf]
          %v389 = vld [vmem:[%s378] sm:$0xff]
          %v390 = vld [vmem:[%s378 + $0x8] sm:$0xff]
          %v391 = vld [vmem:[%s3] sm:$0xf]
          %v392 = vld [vmem:[%s3 + $0x4] sm:$0xf]
          %v393 = vld [vmem:[%s3 + $0x8] sm:$0xf]
          %v394 = vld [vmem:[%s3 + $0xc] sm:$0xf]
          %v395 = vld [vmem:[%s4] sm:$0x1]
          %v397 = vlaneseq
          %v398 = vshrl.u32 %v397, 7
          %v399 = vsub.s32 0, %v398
          %v400 = vrot.slane %v395, %v399
          %v404 = vunpack.c.l.b16 %v387
          %v405 = vunpack.c.l.b16 %v388
          %v406 = vpack.c.b16 %v405, %v404
          %v411 = vunpack.c.l.b16 %v391
          %v412 = vunpack.c.l.b16 %v392
          %v413 = vunpack.c.l.b16 %v393
          %v414 = vunpack.c.l.b16 %v394
          %v415 = vpack.c.b16 %v412, %v411
          %v416 = vpack.c.b16 %v414, %v413
          %vm419 = vcmask 261120
          %v421 = vsel %vm419, %v406, 0
          %423 = vmatprep.subr.bf16.mxu0 0
          %424 = vmatpush1.bf16.msra.mxu0 0
          %425 = vmatprep.subr.bf16.mxu0 0
          %426 = vmatpush1.bf16.msra.mxu0 0
          %427 = vmatprep.subr.bf16.mxu0 0
          %428 = vmatpush1.bf16.msra.mxu0 0
          %429 = vmatprep.subr.bf16.mxu0 0
          %430 = vmatpush1.bf16.msra.mxu0 0
          %431 = vmatprep.subr.bf16.mxu0 0
          %432 = vmatpush1.bf16.msra.mxu0 0
          %433 = vmatprep.subr.bf16.mxu0 0
          %434 = vmatpush1.bf16.msra.mxu0 0
          %435 = vmatprep.subr.bf16.mxu0 0
          %436 = vmatpush1.bf16.msra.mxu0 %v416
          %437 = vmatprep.subr.bf16.mxu0 0
          %438 = vmatpush1.bf16.msra.mxu0 %v415
          %439 = vmatprep.subr.bf16.mxu0 0
          %440 = vmatpush2.bf16.msra.mxu0 0
          %441 = vmatprep.subr.bf16.mxu0 0
          %442 = vmatpush2.bf16.msra.mxu0 0
          %443 = vmatprep.subr.bf16.mxu0 0
          %444 = vmatpush2.bf16.msra.mxu0 0
          %445 = vmatprep.subr.bf16.mxu0 0
          %446 = vmatpush2.bf16.msra.mxu0 0
          %447 = vmatprep.subr.bf16.mxu0 0
          %448 = vmatpush2.bf16.msra.mxu0 0
          %449 = vmatprep.subr.bf16.mxu0 0
          %450 = vmatpush2.bf16.msra.mxu0 0
          %451 = vmatprep.subr.bf16.mxu0 0
          %452 = vmatpush2.bf16.msra.mxu0 0
          %453 = vmatprep.subr.bf16.mxu0 0
          %454 = vmatpush2.bf16.msra.mxu0 0
          %455 = vmatprep.mubr.bf16.mxu0 0
          %456 = vmatmul.mubr.bf16.gmra.mxu0 %v421
          %v457 = vpop.f32.mrf.mxu0
          %v458 = vadd.f32 %v400, %v457
          %v459 = vpop.f32.mrf.mxu0
          %v460 = vpop.f32.mrf.mxu0
          %v461 = vadd.f32 %v400, %v460
          %v462 = vpop.f32.mrf.mxu0
          %463 = vdwg.mxu0
          %465 = vset.pattern.permute.xlu0 0
          %466 = vperm.xlu0 %465, %v389
          %v467 = vpop.permute.xlu0 %466
          %470 = vset.pattern.permute.xlu0 0
          %471 = vperm.xlu0 %470, %v390
          %v472 = vpop.permute.xlu0 %471
          %v474 = vmul.f32 %v458, %v467
          %v475 = vmul.f32 %v461, %v472
          %478 = vrot.lane.b32.xlu0 %v458, 120
          %v479 = vpop.permute.xlu0 %478
          %480 = vrot.lane.b32.xlu0 %v461, 120
          %v481 = vpop.permute.xlu0 %480
          %484 = vrot.lane.b32.xlu0 %v458, 112
          %v485 = vpop.permute.xlu0 %484
          %486 = vrot.lane.b32.xlu0 %v461, 112
          %v487 = vpop.permute.xlu0 %486
          %490 = vrot.lane.b32.xlu0 %v458, 104
          %v491 = vpop.permute.xlu0 %490
          %492 = vrot.lane.b32.xlu0 %v461, 104
          %v493 = vpop.permute.xlu0 %492
          %v496 = vcombine.low %v458, %v485
          %v497 = vcombine.high %v458, %v485
          %v499 = vunpack.c.l.s4 1983009808
          %v500 = vunpack.c.0.s8 %v499
          %v501 = vlaneseq
          %v502 = vshrl.u32 %v501, 7
          %v503 = vsub.s32 %v500, %v502
          %v504 = vrot.slane %v496, %v503
          %v506 = vunpack.c.l.s4 1983009808
          %v507 = vunpack.c.0.s8 %v506
          %v508 = vlaneseq
          %v509 = vshrl.u32 %v508, 7
          %v510 = vsub.s32 %v507, %v509
          %v511 = vrot.slane %v497, %v510
          %v512 = vcombine.low %v479, %v491
          %v513 = vcombine.high %v479, %v491
          %v515 = vunpack.c.l.s4 1983009808
          %v516 = vunpack.c.0.s8 %v515
          %v517 = vlaneseq
          %v518 = vshrl.u32 %v517, 7
          %v519 = vsub.s32 %v516, %v518
          %v520 = vrot.slane %v512, %v519
          %v522 = vunpack.c.l.s4 1983009808
          %v523 = vunpack.c.0.s8 %v522
          %v524 = vlaneseq
          %v525 = vshrl.u32 %v524, 7
          %v526 = vsub.s32 %v523, %v525
          %v527 = vrot.slane %v513, %v526
          %v528 = vcombine.low %v504, %v520
          %v529 = vcombine.high %v504, %v520
          %v531 = vunpack.c.l.s4 1934713408
          %v532 = vunpack.c.0.s8 %v531
          %v533 = vlaneseq
          %v534 = vshrl.u32 %v533, 7
          %v535 = vsub.s32 %v532, %v534
          %v536 = vrot.slane %v528, %v535
          %v538 = vunpack.c.l.s4 1934713408
          %v539 = vunpack.c.0.s8 %v538
          %v540 = vlaneseq
          %v541 = vshrl.u32 %v540, 7
          %v542 = vsub.s32 %v539, %v541
          %v543 = vrot.slane %v529, %v542
          %v544 = vcombine.low %v511, %v527
          %v545 = vcombine.high %v511, %v527
          %v547 = vunpack.c.l.s4 1934713408
          %v548 = vunpack.c.0.s8 %v547
          %v549 = vlaneseq
          %v550 = vshrl.u32 %v549, 7
          %v551 = vsub.s32 %v548, %v550
          %v552 = vrot.slane %v544, %v551
          %v554 = vunpack.c.l.s4 1934713408
          %v555 = vunpack.c.0.s8 %v554
          %v556 = vlaneseq
          %v557 = vshrl.u32 %v556, 7
          %v558 = vsub.s32 %v555, %v557
          %v559 = vrot.slane %v545, %v558
          %v560 = vcombine.high %v536, 0.0
          %v561 = vcombine.high %v543, 0.0
          %v562 = vcombine.high %v552, 0.0
          %v563 = vcombine.high %v559, 0.0
          %v564 = vcombine.low %v461, %v487
          %v565 = vcombine.high %v461, %v487
          %v567 = vunpack.c.l.s4 1983009808
          %v568 = vunpack.c.0.s8 %v567
          %v569 = vlaneseq
          %v570 = vshrl.u32 %v569, 7
          %v571 = vsub.s32 %v568, %v570
          %v572 = vrot.slane %v564, %v571
          %v574 = vunpack.c.l.s4 1983009808
          %v575 = vunpack.c.0.s8 %v574
          %v576 = vlaneseq
          %v577 = vshrl.u32 %v576, 7
          %v578 = vsub.s32 %v575, %v577
          %v579 = vrot.slane %v565, %v578
          %v580 = vcombine.low %v481, %v493
          %v581 = vcombine.high %v481, %v493
          %v583 = vunpack.c.l.s4 1983009808
          %v584 = vunpack.c.0.s8 %v583
          %v585 = vlaneseq
          %v586 = vshrl.u32 %v585, 7
          %v587 = vsub.s32 %v584, %v586
          %v588 = vrot.slane %v580, %v587
          %v590 = vunpack.c.l.s4 1983009808
          %v591 = vunpack.c.0.s8 %v590
          %v592 = vlaneseq
          %v593 = vshrl.u32 %v592, 7
          %v594 = vsub.s32 %v591, %v593
          %v595 = vrot.slane %v581, %v594
          %v596 = vcombine.low %v572, %v588
          %v597 = vcombine.high %v572, %v588
          %v599 = vunpack.c.l.s4 1934713408
          %v600 = vunpack.c.0.s8 %v599
          %v601 = vlaneseq
          %v602 = vshrl.u32 %v601, 7
          %v603 = vsub.s32 %v600, %v602
          %v604 = vrot.slane %v596, %v603
          %v606 = vunpack.c.l.s4 1934713408
          %v607 = vunpack.c.0.s8 %v606
          %v608 = vlaneseq
          %v609 = vshrl.u32 %v608, 7
          %v610 = vsub.s32 %v607, %v609
          %v611 = vrot.slane %v597, %v610
          %v612 = vcombine.low %v579, %v595
          %v613 = vcombine.high %v579, %v595
          %v615 = vunpack.c.l.s4 1934713408
          %v616 = vunpack.c.0.s8 %v615
          %v617 = vlaneseq
          %v618 = vshrl.u32 %v617, 7
          %v619 = vsub.s32 %v616, %v618
          %v620 = vrot.slane %v612, %v619
          %v622 = vunpack.c.l.s4 1934713408
          %v623 = vunpack.c.0.s8 %v622
          %v624 = vlaneseq
          %v625 = vshrl.u32 %v624, 7
          %v626 = vsub.s32 %v623, %v625
          %v627 = vrot.slane %v613, %v626
          %v628 = vcombine.high %v604, 0.0
          %v629 = vcombine.high %v611, 0.0
          %v630 = vcombine.high %v620, 0.0
          %v631 = vcombine.high %v627, 0.0
          %v632 = vcombine.low %v536, %v543
          %v634 = vunpack.c.l.s4 1983009808
          %v635 = vunpack.c.0.s8 %v634
          %v636 = vlaneseq
          %v637 = vshrl.u32 %v636, 7
          %v638 = vsub.s32 %v635, %v637
          %v639 = vrot.slane %v632, %v638
          %v640 = vcombine.low %v560, %v561
          %v642 = vunpack.c.l.s4 1983009808
          %v643 = vunpack.c.0.s8 %v642
          %v644 = vlaneseq
          %v645 = vshrl.u32 %v644, 7
          %v646 = vsub.s32 %v643, %v645
          %v647 = vrot.slane %v640, %v646
          %v648 = vcombine.low %v552, %v559
          %v650 = vunpack.c.l.s4 1983009808
          %v651 = vunpack.c.0.s8 %v650
          %v652 = vlaneseq
          %v653 = vshrl.u32 %v652, 7
          %v654 = vsub.s32 %v651, %v653
          %v655 = vrot.slane %v648, %v654
          %v656 = vcombine.low %v562, %v563
          %v658 = vunpack.c.l.s4 1983009808
          %v659 = vunpack.c.0.s8 %v658
          %v660 = vlaneseq
          %v661 = vshrl.u32 %v660, 7
          %v662 = vsub.s32 %v659, %v661
          %v663 = vrot.slane %v656, %v662
          %v664 = vcombine.low %v639, %v647
          %v665 = vcombine.high %v639, %v647
          %v667 = vunpack.c.l.s4 1934713408
          %v668 = vunpack.c.0.s8 %v667
          %v669 = vlaneseq
          %v670 = vshrl.u32 %v669, 7
          %v671 = vsub.s32 %v668, %v670
          %v672 = vrot.slane %v664, %v671
          %v674 = vunpack.c.l.s4 1934713408
          %v675 = vunpack.c.0.s8 %v674
          %v676 = vlaneseq
          %v677 = vshrl.u32 %v676, 7
          %v678 = vsub.s32 %v675, %v677
          %v679 = vrot.slane %v665, %v678
          %v680 = vcombine.low %v655, %v663
          %v681 = vcombine.high %v655, %v663
          %v683 = vunpack.c.l.s4 1934713408
          %v684 = vunpack.c.0.s8 %v683
          %v685 = vlaneseq
          %v686 = vshrl.u32 %v685, 7
          %v687 = vsub.s32 %v684, %v686
          %v688 = vrot.slane %v680, %v687
          %v690 = vunpack.c.l.s4 1934713408
          %v691 = vunpack.c.0.s8 %v690
          %v692 = vlaneseq
          %v693 = vshrl.u32 %v692, 7
          %v694 = vsub.s32 %v691, %v693
          %v695 = vrot.slane %v681, %v694
          %v696 = vcombine.low %v672, %v688
          %v697 = vcombine.high %v672, %v688
          %v698 = vcombine.low %v679, %v695
          %v699 = vcombine.high %v679, %v695
          %v700 = vcombine.low %v604, %v611
          %v702 = vunpack.c.l.s4 1983009808
          %v703 = vunpack.c.0.s8 %v702
          %v704 = vlaneseq
          %v705 = vshrl.u32 %v704, 7
          %v706 = vsub.s32 %v703, %v705
          %v707 = vrot.slane %v700, %v706
          %v708 = vcombine.low %v628, %v629
          %v710 = vunpack.c.l.s4 1983009808
          %v711 = vunpack.c.0.s8 %v710
          %v712 = vlaneseq
          %v713 = vshrl.u32 %v712, 7
          %v714 = vsub.s32 %v711, %v713
          %v715 = vrot.slane %v708, %v714
          %v716 = vcombine.low %v620, %v627
          %v718 = vunpack.c.l.s4 1983009808
          %v719 = vunpack.c.0.s8 %v718
          %v720 = vlaneseq
          %v721 = vshrl.u32 %v720, 7
          %v722 = vsub.s32 %v719, %v721
          %v723 = vrot.slane %v716, %v722
          %v724 = vcombine.low %v630, %v631
          %v726 = vunpack.c.l.s4 1983009808
          %v727 = vunpack.c.0.s8 %v726
          %v728 = vlaneseq
          %v729 = vshrl.u32 %v728, 7
          %v730 = vsub.s32 %v727, %v729
          %v731 = vrot.slane %v724, %v730
          %v732 = vcombine.low %v707, %v715
          %v733 = vcombine.high %v707, %v715
          %v735 = vunpack.c.l.s4 1934713408
          %v736 = vunpack.c.0.s8 %v735
          %v737 = vlaneseq
          %v738 = vshrl.u32 %v737, 7
          %v739 = vsub.s32 %v736, %v738
          %v740 = vrot.slane %v732, %v739
          %v742 = vunpack.c.l.s4 1934713408
          %v743 = vunpack.c.0.s8 %v742
          %v744 = vlaneseq
          %v745 = vshrl.u32 %v744, 7
          %v746 = vsub.s32 %v743, %v745
          %v747 = vrot.slane %v733, %v746
          %v748 = vcombine.low %v723, %v731
          %v749 = vcombine.high %v723, %v731
          %v751 = vunpack.c.l.s4 1934713408
          %v752 = vunpack.c.0.s8 %v751
          %v753 = vlaneseq
          %v754 = vshrl.u32 %v753, 7
          %v755 = vsub.s32 %v752, %v754
          %v756 = vrot.slane %v748, %v755
          %v758 = vunpack.c.l.s4 1934713408
          %v759 = vunpack.c.0.s8 %v758
          %v760 = vlaneseq
          %v761 = vshrl.u32 %v760, 7
          %v762 = vsub.s32 %v759, %v761
          %v763 = vrot.slane %v749, %v762
          %v764 = vcombine.low %v740, %v756
          %v765 = vcombine.high %v740, %v756
          %v766 = vcombine.low %v747, %v763
          %v767 = vcombine.high %v747, %v763
          %v768 = vpack.c.bf16 %v764, %v696
          %v769 = vpack.c.bf16 %v765, %v697
          %v770 = vpack.c.bf16 %v766, %v698
          %v771 = vpack.c.bf16 %v767, %v699
          %v776 = vunpack.c.l.b16 %v768
          %v777 = vunpack.c.h.b16 %v768
          %v778 = vunpack.c.l.b16 %v769
          %v779 = vunpack.c.h.b16 %v769
          %v780 = vunpack.c.l.b16 %v770
          %v781 = vunpack.c.h.b16 %v770
          %v782 = vunpack.c.l.b16 %v771
          %v783 = vunpack.c.h.b16 %v771
          %v784 = vpack.c.b16 %v776, %v776
          %v785 = vpack.c.b16 %v777, %v777
          %v786 = vpack.c.b16 %v778, %v778
          %v787 = vpack.c.b16 %v779, %v779
          %v788 = vpack.c.b16 %v780, %v780
          %v789 = vpack.c.b16 %v781, %v781
          %v790 = vpack.c.b16 %v782, %v782
          %v791 = vpack.c.b16 %v783, %v783
          %vm800 = vcmask 60416
          %801 = vst.msk [vmem:[#allocation2] sm:$0xf] %vm800, %v784
          %802 = vst.msk [vmem:[#allocation2 + $0x4] sm:$0xf] %vm800, %v785
          %803 = vst.msk [vmem:[#allocation2 + $0x8] sm:$0xf] %vm800, %v786
          %804 = vst.msk [vmem:[#allocation2 + $0xc] sm:$0xf] %vm800, %v787
          %805 = vst.msk [vmem:[#allocation2 + $0x10] sm:$0xf] %vm800, %v788
          %806 = vst.msk [vmem:[#allocation2 + $0x14] sm:$0xf] %vm800, %v789
          %807 = vst.msk [vmem:[#allocation2 + $0x18] sm:$0xf] %vm800, %v790
          %808 = vst.msk [vmem:[#allocation2 + $0x1c] sm:$0xf] %vm800, %v791
          %809 = vrot.lane.b32.xlu0 %v458, 96
          %v810 = vpop.permute.xlu0 %809
          %811 = vrot.lane.b32.xlu0 %v461, 96
          %v812 = vpop.permute.xlu0 %811
          %813 = vrot.lane.b32.xlu0 %v479, 96
          %v814 = vpop.permute.xlu0 %813
          %815 = vrot.lane.b32.xlu0 %v481, 96
          %v816 = vpop.permute.xlu0 %815
          %817 = vrot.lane.b32.xlu0 %v485, 96
          %v818 = vpop.permute.xlu0 %817
          %819 = vrot.lane.b32.xlu0 %v487, 96
          %v820 = vpop.permute.xlu0 %819
          %821 = vrot.lane.b32.xlu0 %v491, 96
          %v822 = vpop.permute.xlu0 %821
          %823 = vrot.lane.b32.xlu0 %v493, 96
          %v824 = vpop.permute.xlu0 %823
          %v833 = vcombine.low %v810, %v818
          %v834 = vcombine.high %v810, %v818
          %v836 = vunpack.c.l.s4 1983009808
          %v837 = vunpack.c.0.s8 %v836
          %v838 = vlaneseq
          %v839 = vshrl.u32 %v838, 7
          %v840 = vsub.s32 %v837, %v839
          %v841 = vrot.slane %v833, %v840
          %v843 = vunpack.c.l.s4 1983009808
          %v844 = vunpack.c.0.s8 %v843
          %v845 = vlaneseq
          %v846 = vshrl.u32 %v845, 7
          %v847 = vsub.s32 %v844, %v846
          %v848 = vrot.slane %v834, %v847
          %v849 = vcombine.low %v814, %v822
          %v850 = vcombine.high %v814, %v822
          %v852 = vunpack.c.l.s4 1983009808
          %v853 = vunpack.c.0.s8 %v852
          %v854 = vlaneseq
          %v855 = vshrl.u32 %v854, 7
          %v856 = vsub.s32 %v853, %v855
          %v857 = vrot.slane %v849, %v856
          %v859 = vunpack.c.l.s4 1983009808
          %v860 = vunpack.c.0.s8 %v859
          %v861 = vlaneseq
          %v862 = vshrl.u32 %v861, 7
          %v863 = vsub.s32 %v860, %v862
          %v864 = vrot.slane %v850, %v863
          %v865 = vcombine.low %v841, %v857
          %v866 = vcombine.high %v841, %v857
          %v868 = vunpack.c.l.s4 1934713408
          %v869 = vunpack.c.0.s8 %v868
          %v870 = vlaneseq
          %v871 = vshrl.u32 %v870, 7
          %v872 = vsub.s32 %v869, %v871
          %v873 = vrot.slane %v865, %v872
          %v875 = vunpack.c.l.s4 1934713408
          %v876 = vunpack.c.0.s8 %v875
          %v877 = vlaneseq
          %v878 = vshrl.u32 %v877, 7
          %v879 = vsub.s32 %v876, %v878
          %v880 = vrot.slane %v866, %v879
          %v881 = vcombine.low %v848, %v864
          %v882 = vcombine.high %v848, %v864
          %v884 = vunpack.c.l.s4 1934713408
          %v885 = vunpack.c.0.s8 %v884
          %v886 = vlaneseq
          %v887 = vshrl.u32 %v886, 7
          %v888 = vsub.s32 %v885, %v887
          %v889 = vrot.slane %v881, %v888
          %v891 = vunpack.c.l.s4 1934713408
          %v892 = vunpack.c.0.s8 %v891
          %v893 = vlaneseq
          %v894 = vshrl.u32 %v893, 7
          %v895 = vsub.s32 %v892, %v894
          %v896 = vrot.slane %v882, %v895
          %v897 = vcombine.high %v873, 0.0
          %v898 = vcombine.high %v880, 0.0
          %v899 = vcombine.high %v889, 0.0
          %v900 = vcombine.high %v896, 0.0
          %v901 = vcombine.low %v812, %v820
          %v902 = vcombine.high %v812, %v820
          %v904 = vunpack.c.l.s4 1983009808
          %v905 = vunpack.c.0.s8 %v904
          %v906 = vlaneseq
          %v907 = vshrl.u32 %v906, 7
          %v908 = vsub.s32 %v905, %v907
          %v909 = vrot.slane %v901, %v908
          %v911 = vunpack.c.l.s4 1983009808
          %v912 = vunpack.c.0.s8 %v911
          %v913 = vlaneseq
          %v914 = vshrl.u32 %v913, 7
          %v915 = vsub.s32 %v912, %v914
          %v916 = vrot.slane %v902, %v915
          %v917 = vcombine.low %v816, %v824
          %v918 = vcombine.high %v816, %v824
          %v920 = vunpack.c.l.s4 1983009808
          %v921 = vunpack.c.0.s8 %v920
          %v922 = vlaneseq
          %v923 = vshrl.u32 %v922, 7
          %v924 = vsub.s32 %v921, %v923
          %v925 = vrot.slane %v917, %v924
          %v927 = vunpack.c.l.s4 1983009808
          %v928 = vunpack.c.0.s8 %v927
          %v929 = vlaneseq
          %v930 = vshrl.u32 %v929, 7
          %v931 = vsub.s32 %v928, %v930
          %v932 = vrot.slane %v918, %v931
          %v933 = vcombine.low %v909, %v925
          %v934 = vcombine.high %v909, %v925
          %v936 = vunpack.c.l.s4 1934713408
          %v937 = vunpack.c.0.s8 %v936
          %v938 = vlaneseq
          %v939 = vshrl.u32 %v938, 7
          %v940 = vsub.s32 %v937, %v939
          %v941 = vrot.slane %v933, %v940
          %v943 = vunpack.c.l.s4 1934713408
          %v944 = vunpack.c.0.s8 %v943
          %v945 = vlaneseq
          %v946 = vshrl.u32 %v945, 7
          %v947 = vsub.s32 %v944, %v946
          %v948 = vrot.slane %v934, %v947
          %v949 = vcombine.low %v916, %v932
          %v950 = vcombine.high %v916, %v932
          %v952 = vunpack.c.l.s4 1934713408
          %v953 = vunpack.c.0.s8 %v952
          %v954 = vlaneseq
          %v955 = vshrl.u32 %v954, 7
          %v956 = vsub.s32 %v953, %v955
          %v957 = vrot.slane %v949, %v956
          %v959 = vunpack.c.l.s4 1934713408
          %v960 = vunpack.c.0.s8 %v959
          %v961 = vlaneseq
          %v962 = vshrl.u32 %v961, 7
          %v963 = vsub.s32 %v960, %v962
          %v964 = vrot.slane %v950, %v963
          %v965 = vcombine.high %v941, 0.0
          %v966 = vcombine.high %v948, 0.0
          %v967 = vcombine.high %v957, 0.0
          %v968 = vcombine.high %v964, 0.0
          %v969 = vcombine.low %v873, %v880
          %v971 = vunpack.c.l.s4 1983009808
          %v972 = vunpack.c.0.s8 %v971
          %v973 = vlaneseq
          %v974 = vshrl.u32 %v973, 7
          %v975 = vsub.s32 %v972, %v974
          %v976 = vrot.slane %v969, %v975
          %v977 = vcombine.low %v897, %v898
          %v979 = vunpack.c.l.s4 1983009808
          %v980 = vunpack.c.0.s8 %v979
          %v981 = vlaneseq
          %v982 = vshrl.u32 %v981, 7
          %v983 = vsub.s32 %v980, %v982
          %v984 = vrot.slane %v977, %v983
          %v985 = vcombine.low %v889, %v896
          %v987 = vunpack.c.l.s4 1983009808
          %v988 = vunpack.c.0.s8 %v987
          %v989 = vlaneseq
          %v990 = vshrl.u32 %v989, 7
          %v991 = vsub.s32 %v988, %v990
          %v992 = vrot.slane %v985, %v991
          %v993 = vcombine.low %v899, %v900
          %v995 = vunpack.c.l.s4 1983009808
          %v996 = vunpack.c.0.s8 %v995
          %v997 = vlaneseq
          %v998 = vshrl.u32 %v997, 7
          %v999 = vsub.s32 %v996, %v998
          %v1000 = vrot.slane %v993, %v999
          %v1001 = vcombine.low %v976, %v984
          %v1002 = vcombine.high %v976, %v984
          %v1004 = vunpack.c.l.s4 1934713408
          %v1005 = vunpack.c.0.s8 %v1004
          %v1006 = vlaneseq
          %v1007 = vshrl.u32 %v1006, 7
          %v1008 = vsub.s32 %v1005, %v1007
          %v1009 = vrot.slane %v1001, %v1008
          %v1011 = vunpack.c.l.s4 1934713408
          %v1012 = vunpack.c.0.s8 %v1011
          %v1013 = vlaneseq
          %v1014 = vshrl.u32 %v1013, 7
          %v1015 = vsub.s32 %v1012, %v1014
          %v1016 = vrot.slane %v1002, %v1015
          %v1017 = vcombine.low %v992, %v1000
          %v1018 = vcombine.high %v992, %v1000
          %v1020 = vunpack.c.l.s4 1934713408
          %v1021 = vunpack.c.0.s8 %v1020
          %v1022 = vlaneseq
          %v1023 = vshrl.u32 %v1022, 7
          %v1024 = vsub.s32 %v1021, %v1023
          %v1025 = vrot.slane %v1017, %v1024
          %v1027 = vunpack.c.l.s4 1934713408
          %v1028 = vunpack.c.0.s8 %v1027
          %v1029 = vlaneseq
          %v1030 = vshrl.u32 %v1029, 7
          %v1031 = vsub.s32 %v1028, %v1030
          %v1032 = vrot.slane %v1018, %v1031
          %v1033 = vcombine.low %v1009, %v1025
          %v1034 = vcombine.high %v1009, %v1025
          %v1035 = vcombine.low %v1016, %v1032
          %v1036 = vcombine.high %v1016, %v1032
          %v1037 = vcombine.low %v941, %v948
          %v1039 = vunpack.c.l.s4 1983009808
          %v1040 = vunpack.c.0.s8 %v1039
          %v1041 = vlaneseq
          %v1042 = vshrl.u32 %v1041, 7
          %v1043 = vsub.s32 %v1040, %v1042
          %v1044 = vrot.slane %v1037, %v1043
          %v1045 = vcombine.low %v965, %v966
          %v1047 = vunpack.c.l.s4 1983009808
          %v1048 = vunpack.c.0.s8 %v1047
          %v1049 = vlaneseq
          %v1050 = vshrl.u32 %v1049, 7
          %v1051 = vsub.s32 %v1048, %v1050
          %v1052 = vrot.slane %v1045, %v1051
          %v1053 = vcombine.low %v957, %v964
          %v1055 = vunpack.c.l.s4 1983009808
          %v1056 = vunpack.c.0.s8 %v1055
          %v1057 = vlaneseq
          %v1058 = vshrl.u32 %v1057, 7
          %v1059 = vsub.s32 %v1056, %v1058
          %v1060 = vrot.slane %v1053, %v1059
          %v1061 = vcombine.low %v967, %v968
          %v1063 = vunpack.c.l.s4 1983009808
          %v1064 = vunpack.c.0.s8 %v1063
          %v1065 = vlaneseq
          %v1066 = vshrl.u32 %v1065, 7
          %v1067 = vsub.s32 %v1064, %v1066
          %v1068 = vrot.slane %v1061, %v1067
          %v1069 = vcombine.low %v1044, %v1052
          %v1070 = vcombine.high %v1044, %v1052
          %v1072 = vunpack.c.l.s4 1934713408
          %v1073 = vunpack.c.0.s8 %v1072
          %v1074 = vlaneseq
          %v1075 = vshrl.u32 %v1074, 7
          %v1076 = vsub.s32 %v1073, %v1075
          %v1077 = vrot.slane %v1069, %v1076
          %v1079 = vunpack.c.l.s4 1934713408
          %v1080 = vunpack.c.0.s8 %v1079
          %v1081 = vlaneseq
          %v1082 = vshrl.u32 %v1081, 7
          %v1083 = vsub.s32 %v1080, %v1082
          %v1084 = vrot.slane %v1070, %v1083
          %v1085 = vcombine.low %v1060, %v1068
          %v1086 = vcombine.high %v1060, %v1068
          %v1088 = vunpack.c.l.s4 1934713408
          %v1089 = vunpack.c.0.s8 %v1088
          %v1090 = vlaneseq
          %v1091 = vshrl.u32 %v1090, 7
          %v1092 = vsub.s32 %v1089, %v1091
          %v1093 = vrot.slane %v1085, %v1092
          %v1095 = vunpack.c.l.s4 1934713408
          %v1096 = vunpack.c.0.s8 %v1095
          %v1097 = vlaneseq
          %v1098 = vshrl.u32 %v1097, 7
          %v1099 = vsub.s32 %v1096, %v1098
          %v1100 = vrot.slane %v1086, %v1099
          %v1101 = vcombine.low %v1077, %v1093
          %v1102 = vcombine.high %v1077, %v1093
          %v1103 = vcombine.low %v1084, %v1100
          %v1104 = vcombine.high %v1084, %v1100
          %v1105 = vpack.c.bf16 %v1101, %v1033
          %v1106 = vpack.c.bf16 %v1102, %v1034
          %v1107 = vpack.c.bf16 %v1103, %v1035
          %v1108 = vpack.c.bf16 %v1104, %v1036
          %v1113 = vunpack.c.l.b16 %v1105
          %v1114 = vunpack.c.h.b16 %v1105
          %v1115 = vunpack.c.l.b16 %v1106
          %v1116 = vunpack.c.h.b16 %v1106
          %v1117 = vunpack.c.l.b16 %v1107
          %v1118 = vunpack.c.h.b16 %v1107
          %v1119 = vunpack.c.l.b16 %v1108
          %v1120 = vunpack.c.h.b16 %v1108
          %v1121 = vpack.c.b16 %v1113, %v1113
          %v1122 = vpack.c.b16 %v1114, %v1114
          %v1123 = vpack.c.b16 %v1115, %v1115
          %v1124 = vpack.c.b16 %v1116, %v1116
          %v1125 = vpack.c.b16 %v1117, %v1117
          %v1126 = vpack.c.b16 %v1118, %v1118
          %v1127 = vpack.c.b16 %v1119, %v1119
          %v1128 = vpack.c.b16 %v1120, %v1120
          %1137 = vst.msk [vmem:[#allocation3] sm:$0xf] %vm800, %v1121
          %1138 = vst.msk [vmem:[#allocation3 + $0x4] sm:$0xf] %vm800, %v1122
          %1139 = vst.msk [vmem:[#allocation3 + $0x8] sm:$0xf] %vm800, %v1123
          %1140 = vst.msk [vmem:[#allocation3 + $0xc] sm:$0xf] %vm800, %v1124
          %1141 = vst.msk [vmem:[#allocation3 + $0x10] sm:$0xf] %vm800, %v1125
          %1142 = vst.msk [vmem:[#allocation3 + $0x14] sm:$0xf] %vm800, %v1126
          %1143 = vst.msk [vmem:[#allocation3 + $0x18] sm:$0xf] %vm800, %v1127
          %1144 = vst.msk [vmem:[#allocation3 + $0x1c] sm:$0xf] %vm800, %v1128
          %1147 = vrot.lane.b32.xlu0 %v474, 120
          %v1148 = vpop.permute.xlu0 %1147
          %1149 = vrot.lane.b32.xlu0 %v475, 120
          %v1150 = vpop.permute.xlu0 %1149
          %1151 = vrot.lane.b32.xlu0 %v474, 112
          %v1152 = vpop.permute.xlu0 %1151
          %1153 = vrot.lane.b32.xlu0 %v475, 112
          %v1154 = vpop.permute.xlu0 %1153
          %1155 = vrot.lane.b32.xlu0 %v474, 104
          %v1156 = vpop.permute.xlu0 %1155
          %1157 = vrot.lane.b32.xlu0 %v475, 104
          %v1158 = vpop.permute.xlu0 %1157
          %1159 = vrot.lane.b32.xlu0 %v474, 64
          %v1160 = vpop.permute.xlu0 %1159
          %1161 = vrot.lane.b32.xlu0 %v475, 64
          %v1162 = vpop.permute.xlu0 %1161
          %1163 = vrot.lane.b32.xlu0 %v1148, 64
          %v1164 = vpop.permute.xlu0 %1163
          %1165 = vrot.lane.b32.xlu0 %v1150, 64
          %v1166 = vpop.permute.xlu0 %1165
          %1167 = vrot.lane.b32.xlu0 %v1152, 64
          %v1168 = vpop.permute.xlu0 %1167
          %1169 = vrot.lane.b32.xlu0 %v1154, 64
          %v1170 = vpop.permute.xlu0 %1169
          %1171 = vrot.lane.b32.xlu0 %v1156, 64
          %v1172 = vpop.permute.xlu0 %1171
          %1173 = vrot.lane.b32.xlu0 %v1158, 64
          %v1174 = vpop.permute.xlu0 %1173
          %v1183 = vcombine.low %v1160, %v1168
          %v1184 = vcombine.high %v1160, %v1168
          %v1186 = vunpack.c.l.s4 1983009808
          %v1187 = vunpack.c.0.s8 %v1186
          %v1188 = vlaneseq
          %v1189 = vshrl.u32 %v1188, 7
          %v1190 = vsub.s32 %v1187, %v1189
          %v1191 = vrot.slane %v1183, %v1190
          %v1193 = vunpack.c.l.s4 1983009808
          %v1194 = vunpack.c.0.s8 %v1193
          %v1195 = vlaneseq
          %v1196 = vshrl.u32 %v1195, 7
          %v1197 = vsub.s32 %v1194, %v1196
          %v1198 = vrot.slane %v1184, %v1197
          %v1199 = vcombine.low %v1164, %v1172
          %v1200 = vcombine.high %v1164, %v1172
          %v1202 = vunpack.c.l.s4 1983009808
          %v1203 = vunpack.c.0.s8 %v1202
          %v1204 = vlaneseq
          %v1205 = vshrl.u32 %v1204, 7
          %v1206 = vsub.s32 %v1203, %v1205
          %v1207 = vrot.slane %v1199, %v1206
          %v1209 = vunpack.c.l.s4 1983009808
          %v1210 = vunpack.c.0.s8 %v1209
          %v1211 = vlaneseq
          %v1212 = vshrl.u32 %v1211, 7
          %v1213 = vsub.s32 %v1210, %v1212
          %v1214 = vrot.slane %v1200, %v1213
          %v1215 = vcombine.low %v1191, %v1207
          %v1216 = vcombine.high %v1191, %v1207
          %v1218 = vunpack.c.l.s4 1934713408
          %v1219 = vunpack.c.0.s8 %v1218
          %v1220 = vlaneseq
          %v1221 = vshrl.u32 %v1220, 7
          %v1222 = vsub.s32 %v1219, %v1221
          %v1223 = vrot.slane %v1215, %v1222
          %v1225 = vunpack.c.l.s4 1934713408
          %v1226 = vunpack.c.0.s8 %v1225
          %v1227 = vlaneseq
          %v1228 = vshrl.u32 %v1227, 7
          %v1229 = vsub.s32 %v1226, %v1228
          %v1230 = vrot.slane %v1216, %v1229
          %v1231 = vcombine.low %v1198, %v1214
          %v1232 = vcombine.high %v1198, %v1214
          %v1234 = vunpack.c.l.s4 1934713408
          %v1235 = vunpack.c.0.s8 %v1234
          %v1236 = vlaneseq
          %v1237 = vshrl.u32 %v1236, 7
          %v1238 = vsub.s32 %v1235, %v1237
          %v1239 = vrot.slane %v1231, %v1238
          %v1241 = vunpack.c.l.s4 1934713408
          %v1242 = vunpack.c.0.s8 %v1241
          %v1243 = vlaneseq
          %v1244 = vshrl.u32 %v1243, 7
          %v1245 = vsub.s32 %v1242, %v1244
          %v1246 = vrot.slane %v1232, %v1245
          %v1247 = vcombine.high %v1223, 0.0
          %v1248 = vcombine.high %v1230, 0.0
          %v1249 = vcombine.high %v1239, 0.0
          %v1250 = vcombine.high %v1246, 0.0
          %v1251 = vcombine.low %v1162, %v1170
          %v1252 = vcombine.high %v1162, %v1170
          %v1254 = vunpack.c.l.s4 1983009808
          %v1255 = vunpack.c.0.s8 %v1254
          %v1256 = vlaneseq
          %v1257 = vshrl.u32 %v1256, 7
          %v1258 = vsub.s32 %v1255, %v1257
          %v1259 = vrot.slane %v1251, %v1258
          %v1261 = vunpack.c.l.s4 1983009808
          %v1262 = vunpack.c.0.s8 %v1261
          %v1263 = vlaneseq
          %v1264 = vshrl.u32 %v1263, 7
          %v1265 = vsub.s32 %v1262, %v1264
          %v1266 = vrot.slane %v1252, %v1265
          %v1267 = vcombine.low %v1166, %v1174
          %v1268 = vcombine.high %v1166, %v1174
          %v1270 = vunpack.c.l.s4 1983009808
          %v1271 = vunpack.c.0.s8 %v1270
          %v1272 = vlaneseq
          %v1273 = vshrl.u32 %v1272, 7
          %v1274 = vsub.s32 %v1271, %v1273
          %v1275 = vrot.slane %v1267, %v1274
          %v1277 = vunpack.c.l.s4 1983009808
          %v1278 = vunpack.c.0.s8 %v1277
          %v1279 = vlaneseq
          %v1280 = vshrl.u32 %v1279, 7
          %v1281 = vsub.s32 %v1278, %v1280
          %v1282 = vrot.slane %v1268, %v1281
          %v1283 = vcombine.low %v1259, %v1275
          %v1284 = vcombine.high %v1259, %v1275
          %v1286 = vunpack.c.l.s4 1934713408
          %v1287 = vunpack.c.0.s8 %v1286
          %v1288 = vlaneseq
          %v1289 = vshrl.u32 %v1288, 7
          %v1290 = vsub.s32 %v1287, %v1289
          %v1291 = vrot.slane %v1283, %v1290
          %v1293 = vunpack.c.l.s4 1934713408
          %v1294 = vunpack.c.0.s8 %v1293
          %v1295 = vlaneseq
          %v1296 = vshrl.u32 %v1295, 7
          %v1297 = vsub.s32 %v1294, %v1296
          %v1298 = vrot.slane %v1284, %v1297
          %v1299 = vcombine.low %v1266, %v1282
          %v1300 = vcombine.high %v1266, %v1282
          %v1302 = vunpack.c.l.s4 1934713408
          %v1303 = vunpack.c.0.s8 %v1302
          %v1304 = vlaneseq
          %v1305 = vshrl.u32 %v1304, 7
          %v1306 = vsub.s32 %v1303, %v1305
          %v1307 = vrot.slane %v1299, %v1306
          %v1309 = vunpack.c.l.s4 1934713408
          %v1310 = vunpack.c.0.s8 %v1309
          %v1311 = vlaneseq
          %v1312 = vshrl.u32 %v1311, 7
          %v1313 = vsub.s32 %v1310, %v1312
          %v1314 = vrot.slane %v1300, %v1313
          %v1315 = vcombine.high %v1291, 0.0
          %v1316 = vcombine.high %v1298, 0.0
          %v1317 = vcombine.high %v1307, 0.0
          %v1318 = vcombine.high %v1314, 0.0
          %v1319 = vcombine.low %v1223, %v1230
          %v1321 = vunpack.c.l.s4 1983009808
          %v1322 = vunpack.c.0.s8 %v1321
          %v1323 = vlaneseq
          %v1324 = vshrl.u32 %v1323, 7
          %v1325 = vsub.s32 %v1322, %v1324
          %v1326 = vrot.slane %v1319, %v1325
          %v1327 = vcombine.low %v1247, %v1248
          %v1329 = vunpack.c.l.s4 1983009808
          %v1330 = vunpack.c.0.s8 %v1329
          %v1331 = vlaneseq
          %v1332 = vshrl.u32 %v1331, 7
          %v1333 = vsub.s32 %v1330, %v1332
          %v1334 = vrot.slane %v1327, %v1333
          %v1335 = vcombine.low %v1239, %v1246
          %v1337 = vunpack.c.l.s4 1983009808
          %v1338 = vunpack.c.0.s8 %v1337
          %v1339 = vlaneseq
          %v1340 = vshrl.u32 %v1339, 7
          %v1341 = vsub.s32 %v1338, %v1340
          %v1342 = vrot.slane %v1335, %v1341
          %v1343 = vcombine.low %v1249, %v1250
          %v1345 = vunpack.c.l.s4 1983009808
          %v1346 = vunpack.c.0.s8 %v1345
          %v1347 = vlaneseq
          %v1348 = vshrl.u32 %v1347, 7
          %v1349 = vsub.s32 %v1346, %v1348
          %v1350 = vrot.slane %v1343, %v1349
          %v1351 = vcombine.low %v1326, %v1334
          %v1352 = vcombine.high %v1326, %v1334
          %v1354 = vunpack.c.l.s4 1934713408
          %v1355 = vunpack.c.0.s8 %v1354
          %v1356 = vlaneseq
          %v1357 = vshrl.u32 %v1356, 7
          %v1358 = vsub.s32 %v1355, %v1357
          %v1359 = vrot.slane %v1351, %v1358
          %v1361 = vunpack.c.l.s4 1934713408
          %v1362 = vunpack.c.0.s8 %v1361
          %v1363 = vlaneseq
          %v1364 = vshrl.u32 %v1363, 7
          %v1365 = vsub.s32 %v1362, %v1364
          %v1366 = vrot.slane %v1352, %v1365
          %v1367 = vcombine.low %v1342, %v1350
          %v1368 = vcombine.high %v1342, %v1350
          %v1370 = vunpack.c.l.s4 1934713408
          %v1371 = vunpack.c.0.s8 %v1370
          %v1372 = vlaneseq
          %v1373 = vshrl.u32 %v1372, 7
          %v1374 = vsub.s32 %v1371, %v1373
          %v1375 = vrot.slane %v1367, %v1374
          %v1377 = vunpack.c.l.s4 1934713408
          %v1378 = vunpack.c.0.s8 %v1377
          %v1379 = vlaneseq
          %v1380 = vshrl.u32 %v1379, 7
          %v1381 = vsub.s32 %v1378, %v1380
          %v1382 = vrot.slane %v1368, %v1381
          %v1383 = vcombine.low %v1359, %v1375
          %v1384 = vcombine.high %v1359, %v1375
          %v1385 = vcombine.low %v1366, %v1382
          %v1386 = vcombine.high %v1366, %v1382
          %v1387 = vcombine.low %v1291, %v1298
          %v1389 = vunpack.c.l.s4 1983009808
          %v1390 = vunpack.c.0.s8 %v1389
          %v1391 = vlaneseq
          %v1392 = vshrl.u32 %v1391, 7
          %v1393 = vsub.s32 %v1390, %v1392
          %v1394 = vrot.slane %v1387, %v1393
          %v1395 = vcombine.low %v1315, %v1316
          %v1397 = vunpack.c.l.s4 1983009808
          %v1398 = vunpack.c.0.s8 %v1397
          %v1399 = vlaneseq
          %v1400 = vshrl.u32 %v1399, 7
          %v1401 = vsub.s32 %v1398, %v1400
          %v1402 = vrot.slane %v1395, %v1401
          %v1403 = vcombine.low %v1307, %v1314
          %v1405 = vunpack.c.l.s4 1983009808
          %v1406 = vunpack.c.0.s8 %v1405
          %v1407 = vlaneseq
          %v1408 = vshrl.u32 %v1407, 7
          %v1409 = vsub.s32 %v1406, %v1408
          %v1410 = vrot.slane %v1403, %v1409
          %v1411 = vcombine.low %v1317, %v1318
          %v1413 = vunpack.c.l.s4 1983009808
          %v1414 = vunpack.c.0.s8 %v1413
          %v1415 = vlaneseq
          %v1416 = vshrl.u32 %v1415, 7
          %v1417 = vsub.s32 %v1414, %v1416
          %v1418 = vrot.slane %v1411, %v1417
          %v1419 = vcombine.low %v1394, %v1402
          %v1420 = vcombine.high %v1394, %v1402
          %v1422 = vunpack.c.l.s4 1934713408
          %v1423 = vunpack.c.0.s8 %v1422
          %v1424 = vlaneseq
          %v1425 = vshrl.u32 %v1424, 7
          %v1426 = vsub.s32 %v1423, %v1425
          %v1427 = vrot.slane %v1419, %v1426
          %v1429 = vunpack.c.l.s4 1934713408
          %v1430 = vunpack.c.0.s8 %v1429
          %v1431 = vlaneseq
          %v1432 = vshrl.u32 %v1431, 7
          %v1433 = vsub.s32 %v1430, %v1432
          %v1434 = vrot.slane %v1420, %v1433
          %v1435 = vcombine.low %v1410, %v1418
          %v1436 = vcombine.high %v1410, %v1418
          %v1438 = vunpack.c.l.s4 1934713408
          %v1439 = vunpack.c.0.s8 %v1438
          %v1440 = vlaneseq
          %v1441 = vshrl.u32 %v1440, 7
          %v1442 = vsub.s32 %v1439, %v1441
          %v1443 = vrot.slane %v1435, %v1442
          %v1445 = vunpack.c.l.s4 1934713408
          %v1446 = vunpack.c.0.s8 %v1445
          %v1447 = vlaneseq
          %v1448 = vshrl.u32 %v1447, 7
          %v1449 = vsub.s32 %v1446, %v1448
          %v1450 = vrot.slane %v1436, %v1449
          %v1451 = vcombine.low %v1427, %v1443
          %v1452 = vcombine.high %v1427, %v1443
          %v1453 = vcombine.low %v1434, %v1450
          %v1454 = vcombine.high %v1434, %v1450
          %v1455 = vpack.c.bf16 %v1451, %v1383
          %v1456 = vpack.c.bf16 %v1452, %v1384
          %v1457 = vpack.c.bf16 %v1453, %v1385
          %v1458 = vpack.c.bf16 %v1454, %v1386
          %v1463 = vunpack.c.l.b16 %v1455
          %v1464 = vunpack.c.h.b16 %v1455
          %v1465 = vunpack.c.l.b16 %v1456
          %v1466 = vunpack.c.h.b16 %v1456
          %v1467 = vunpack.c.l.b16 %v1457
          %v1468 = vunpack.c.h.b16 %v1457
          %v1469 = vunpack.c.l.b16 %v1458
          %v1470 = vunpack.c.h.b16 %v1458
          %v1471 = vpack.c.b16 %v1463, %v1463
          %v1472 = vpack.c.b16 %v1464, %v1464
          %v1473 = vpack.c.b16 %v1465, %v1465
          %v1474 = vpack.c.b16 %v1466, %v1466
          %v1475 = vpack.c.b16 %v1467, %v1467
          %v1476 = vpack.c.b16 %v1468, %v1468
          %v1477 = vpack.c.b16 %v1469, %v1469
          %v1478 = vpack.c.b16 %v1470, %v1470
          %1487 = vst.msk [vmem:[#allocation4] sm:$0xf] %vm800, %v1471
          %1488 = vst.msk [vmem:[#allocation4 + $0x4] sm:$0xf] %vm800, %v1472
          %1489 = vst.msk [vmem:[#allocation4 + $0x8] sm:$0xf] %vm800, %v1473
          %1490 = vst.msk [vmem:[#allocation4 + $0xc] sm:$0xf] %vm800, %v1474
          %1491 = vst.msk [vmem:[#allocation4 + $0x10] sm:$0xf] %vm800, %v1475
          %1492 = vst.msk [vmem:[#allocation4 + $0x14] sm:$0xf] %vm800, %v1476
          %1493 = vst.msk [vmem:[#allocation4 + $0x18] sm:$0xf] %vm800, %v1477
          %1494 = vst.msk [vmem:[#allocation4 + $0x1c] sm:$0xf] %vm800, %v1478
          %v1495 = vlaneseq
          %v1496 = vshrl.u32 %v1495, 7
          %v1497 = vadd.s32 %v1496, 8
          %v1498 = vrot.slane %v1160, 3
          %v1499 = vrot.slane %v1162, 3
          %vm1500 = vcmp.lt.s32.totalorder %v1496, 5
          %v1501 = vsel %vm1500, %v1498, %v1499
          %v1502 = vsel %vm1500, %v1499, %v1498
          %vm1503 = vcmp.ge.s32.totalorder %v1496, 5
          %vm1504 = vcmp.ge.s32.totalorder %v1497, 5
          %vm1505 = vcmp.lt.s32.totalorder %v1496, 21
          %vm1506 = vcmp.lt.s32.totalorder %v1497, 21
          %vm1507 = vmand %vm1503, %vm1505
          %vm1508 = vmand %vm1504, %vm1506
          %v1509 = vsel %vm1507, 1, 0
          %v1510 = vsel %vm1508, 1, 0
          %v1511 = vcvt.s32.f32 %v1509
          %v1512 = vcvt.s32.f32 %v1510
          %v1513 = vld [vmem:[#allocation6] sm:$0x1]
          %v1514 = vlaneseq
          %v1515 = vshrl.u32 %v1514, 7
          %v1516 = vsub.s32 0, %v1515
          %v1517 = vrot.slane %v1513, %v1516
          %v1518 = vmul.f32 %v1502, %v1517
          %v1519 = vmul.f32 %v1501, %v1517
          %v1520 = vmul.f32 %v1518, %v1511
          %v1521 = vmul.f32 %v1519, %v1512
          %1524 = vrot.lane.b32.xlu0 %v1520, 64
          %v1525 = vpop.permute.xlu0 %1524
          %1526 = vrot.lane.b32.xlu0 %v1521, 64
          %v1527 = vpop.permute.xlu0 %1526
          %v1530 = vadd.f32 %v474, %v1525
          %v1531 = vadd.f32 %v475, %v1527
          %v1532 = vrot.slane %v1160, 4
          %v1533 = vrot.slane %v1162, 4
          %vm1534 = vcmp.lt.s32.totalorder %v1496, 4
          %v1535 = vsel %vm1534, %v1532, %v1533
          %v1536 = vsel %vm1534, %v1533, %v1532
          %vm1537 = vcmp.ge.s32.totalorder %v1496, 4
          %vm1538 = vcmp.ge.s32.totalorder %v1497, 4
          %vm1539 = vcmp.lt.s32.totalorder %v1496, 20
          %vm1540 = vcmp.lt.s32.totalorder %v1497, 20
          %vm1541 = vmand %vm1537, %vm1539
          %vm1542 = vmand %vm1538, %vm1540
          %v1543 = vsel %vm1541, 1, 0
          %v1544 = vsel %vm1542, 1, 0
          %v1545 = vcvt.s32.f32 %v1543
          %v1546 = vcvt.s32.f32 %v1544
          %v1547 = vld [vmem:[#allocation6 + $0x1] sm:$0x1]
          %v1548 = vlaneseq
          %v1549 = vshrl.u32 %v1548, 7
          %v1550 = vsub.s32 0, %v1549
          %v1551 = vrot.slane %v1547, %v1550
          %v1552 = vmul.f32 %v1536, %v1551
          %v1553 = vmul.f32 %v1535, %v1551
          %v1554 = vmul.f32 %v1552, %v1545
          %v1555 = vmul.f32 %v1553, %v1546
          %1558 = vrot.lane.b32.xlu0 %v1554, 64
          %v1559 = vpop.permute.xlu0 %1558
          %1560 = vrot.lane.b32.xlu0 %v1555, 64
          %v1561 = vpop.permute.xlu0 %1560
          %v1564 = vadd.f32 %v1530, %v1559
          %v1565 = vadd.f32 %v1531, %v1561
          %v1566 = vrot.slane %v1160, 5
          %v1567 = vrot.slane %v1162, 5
          %vm1568 = vcmp.lt.s32.totalorder %v1496, 3
          %v1569 = vsel %vm1568, %v1566, %v1567
          %v1570 = vsel %vm1568, %v1567, %v1566
          %vm1571 = vcmp.ge.s32.totalorder %v1496, 3
          %vm1572 = vcmp.ge.s32.totalorder %v1497, 3
          %vm1573 = vcmp.lt.s32.totalorder %v1496, 19
          %vm1574 = vcmp.lt.s32.totalorder %v1497, 19
          %vm1575 = vmand %vm1571, %vm1573
          %vm1576 = vmand %vm1572, %vm1574
          %v1577 = vsel %vm1575, 1, 0
          %v1578 = vsel %vm1576, 1, 0
          %v1579 = vcvt.s32.f32 %v1577
          %v1580 = vcvt.s32.f32 %v1578
          %v1581 = vld [vmem:[#allocation6 + $0x2] sm:$0x1]
          %v1582 = vlaneseq
          %v1583 = vshrl.u32 %v1582, 7
          %v1584 = vsub.s32 0, %v1583
          %v1585 = vrot.slane %v1581, %v1584
          %v1586 = vmul.f32 %v1570, %v1585
          %v1587 = vmul.f32 %v1569, %v1585
          %v1588 = vmul.f32 %v1586, %v1579
          %v1589 = vmul.f32 %v1587, %v1580
          %1592 = vrot.lane.b32.xlu0 %v1588, 64
          %v1593 = vpop.permute.xlu0 %1592
          %1594 = vrot.lane.b32.xlu0 %v1589, 64
          %v1595 = vpop.permute.xlu0 %1594
          %v1598 = vadd.f32 %v1564, %v1593
          %v1599 = vadd.f32 %v1565, %v1595
          %v1600 = vrot.slane %v1160, 6
          %v1601 = vrot.slane %v1162, 6
          %vm1602 = vcmp.lt.s32.totalorder %v1496, 2
          %v1603 = vsel %vm1602, %v1600, %v1601
          %v1604 = vsel %vm1602, %v1601, %v1600
          %vm1605 = vcmp.ge.s32.totalorder %v1496, 2
          %vm1606 = vcmp.ge.s32.totalorder %v1497, 2
          %vm1607 = vcmp.lt.s32.totalorder %v1496, 18
          %vm1608 = vcmp.lt.s32.totalorder %v1497, 18
          %vm1609 = vmand %vm1605, %vm1607
          %vm1610 = vmand %vm1606, %vm1608
          %v1611 = vsel %vm1609, 1, 0
          %v1612 = vsel %vm1610, 1, 0
          %v1613 = vcvt.s32.f32 %v1611
          %v1614 = vcvt.s32.f32 %v1612
          %v1615 = vld [vmem:[#allocation6 + $0x3] sm:$0x1]
          %v1616 = vlaneseq
          %v1617 = vshrl.u32 %v1616, 7
          %v1618 = vsub.s32 0, %v1617
          %v1619 = vrot.slane %v1615, %v1618
          %v1620 = vmul.f32 %v1604, %v1619
          %v1621 = vmul.f32 %v1603, %v1619
          %v1622 = vmul.f32 %v1620, %v1613
          %v1623 = vmul.f32 %v1621, %v1614
          %1626 = vrot.lane.b32.xlu0 %v1622, 64
          %v1627 = vpop.permute.xlu0 %1626
          %1628 = vrot.lane.b32.xlu0 %v1623, 64
          %v1629 = vpop.permute.xlu0 %1628
          %v1632 = vadd.f32 %v1598, %v1627
          %v1633 = vadd.f32 %v1599, %v1629
          %v1634 = vrot.slane %v1160, 7
          %v1635 = vrot.slane %v1162, 7
          %vm1636 = vcmp.lt.s32.totalorder %v1496, 1
          %v1637 = vsel %vm1636, %v1634, %v1635
          %v1638 = vsel %vm1636, %v1635, %v1634
          %vm1639 = vcmp.ge.s32.totalorder %v1496, 1
          %vm1640 = vcmp.ge.s32.totalorder %v1497, 1
          %vm1641 = vcmp.lt.s32.totalorder %v1496, 17
          %vm1642 = vcmp.lt.s32.totalorder %v1497, 17
          %vm1643 = vmand %vm1639, %vm1641
          %vm1644 = vmand %vm1640, %vm1642
          %v1645 = vsel %vm1643, 1, 0
          %v1646 = vsel %vm1644, 1, 0
          %v1647 = vcvt.s32.f32 %v1645
          %v1648 = vcvt.s32.f32 %v1646
          %v1649 = vld [vmem:[#allocation6 + $0x4] sm:$0x1]
          %v1650 = vlaneseq
          %v1651 = vshrl.u32 %v1650, 7
          %v1652 = vsub.s32 0, %v1651
          %v1653 = vrot.slane %v1649, %v1652
          %v1654 = vmul.f32 %v1638, %v1653
          %v1655 = vmul.f32 %v1637, %v1653
          %v1656 = vmul.f32 %v1654, %v1647
          %v1657 = vmul.f32 %v1655, %v1648
          %1660 = vrot.lane.b32.xlu0 %v1656, 64
          %v1661 = vpop.permute.xlu0 %1660
          %1662 = vrot.lane.b32.xlu0 %v1657, 64
          %v1663 = vpop.permute.xlu0 %1662
          %v1666 = vadd.f32 %v1632, %v1661
          %v1667 = vadd.f32 %v1633, %v1663
          %vm1668 = vcmp.ge.s32.totalorder %v1496, 0
          %vm1669 = vcmp.ge.s32.totalorder %v1497, 0
          %vm1670 = vcmp.lt.s32.totalorder %v1496, 16
          %vm1671 = vcmp.lt.s32.totalorder %v1497, 16
          %vm1672 = vmand %vm1668, %vm1670
          %vm1673 = vmand %vm1669, %vm1671
          %v1674 = vsel %vm1672, 1, 0
          %v1675 = vsel %vm1673, 1, 0
          %v1676 = vcvt.s32.f32 %v1674
          %v1677 = vcvt.s32.f32 %v1675
          %v1678 = vld [vmem:[#allocation6 + $0x5] sm:$0x1]
          %v1679 = vlaneseq
          %v1680 = vshrl.u32 %v1679, 7
          %v1681 = vsub.s32 0, %v1680
          %v1682 = vrot.slane %v1678, %v1681
          %1684 = vrot.lane.b32.xlu0 %v1682, 64
          %v1685 = vpop.permute.xlu0 %1684
          %v1687 = vmul.f32 %v474, %v1685
          %v1688 = vmul.f32 %v475, %v1685
          %v1689 = vmul.f32 %v1687, %v1676
          %v1690 = vmul.f32 %v1688, %v1677
          %v1691 = vadd.f32 %v1666, %v1689
          %v1692 = vadd.f32 %v1667, %v1690
          %v1693 = vrot.slane %v1160, 1
          %v1694 = vrot.slane %v1162, 1
          %vm1695 = vcmp.lt.s32.totalorder %v1496, 7
          %v1696 = vsel %vm1695, %v1693, %v1694
          %v1697 = vsel %vm1695, %v1694, %v1693
          %vm1698 = vcmp.ge.s32.totalorder %v1496, 4294967295
          %vm1699 = vcmp.ge.s32.totalorder %v1497, 4294967295
          %vm1700 = vcmp.lt.s32.totalorder %v1496, 15
          %vm1701 = vcmp.lt.s32.totalorder %v1497, 15
          %vm1702 = vmand %vm1698, %vm1700
          %vm1703 = vmand %vm1699, %vm1701
          %v1704 = vsel %vm1702, 1, 0
          %v1705 = vsel %vm1703, 1, 0
          %v1706 = vcvt.s32.f32 %v1704
          %v1707 = vcvt.s32.f32 %v1705
          %v1708 = vld [vmem:[#allocation6 + $0x6] sm:$0x1]
          %v1709 = vlaneseq
          %v1710 = vshrl.u32 %v1709, 7
          %v1711 = vsub.s32 0, %v1710
          %v1712 = vrot.slane %v1708, %v1711
          %v1713 = vmul.f32 %v1696, %v1712
          %v1714 = vmul.f32 %v1697, %v1712
          %v1715 = vmul.f32 %v1713, %v1706
          %v1716 = vmul.f32 %v1714, %v1707
          %1719 = vrot.lane.b32.xlu0 %v1715, 64
          %v1720 = vpop.permute.xlu0 %1719
          %1721 = vrot.lane.b32.xlu0 %v1716, 64
          %v1722 = vpop.permute.xlu0 %1721
          %v1725 = vadd.f32 %v1691, %v1720
          %v1726 = vadd.f32 %v1692, %v1722
          %v1727 = vrot.slane %v1160, 2
          %v1728 = vrot.slane %v1162, 2
          %vm1729 = vcmp.lt.s32.totalorder %v1496, 6
          %v1730 = vsel %vm1729, %v1727, %v1728
          %v1731 = vsel %vm1729, %v1728, %v1727
          %vm1732 = vcmp.ge.s32.totalorder %v1496, 4294967294
          %vm1733 = vcmp.ge.s32.totalorder %v1497, 4294967294
          %vm1734 = vcmp.lt.s32.totalorder %v1496, 14
          %vm1735 = vcmp.lt.s32.totalorder %v1497, 14
          %vm1736 = vmand %vm1732, %vm1734
          %vm1737 = vmand %vm1733, %vm1735
          %v1738 = vsel %vm1736, 1, 0
          %v1739 = vsel %vm1737, 1, 0
          %v1740 = vcvt.s32.f32 %v1738
          %v1741 = vcvt.s32.f32 %v1739
          %v1742 = vld [vmem:[#allocation6 + $0x7] sm:$0x1]
          %v1743 = vlaneseq
          %v1744 = vshrl.u32 %v1743, 7
          %v1745 = vsub.s32 0, %v1744
          %v1746 = vrot.slane %v1742, %v1745
          %v1747 = vmul.f32 %v1730, %v1746
          %v1748 = vmul.f32 %v1731, %v1746
          %v1749 = vmul.f32 %v1747, %v1740
          %v1750 = vmul.f32 %v1748, %v1741
          %1753 = vrot.lane.b32.xlu0 %v1749, 64
          %v1754 = vpop.permute.xlu0 %1753
          %1755 = vrot.lane.b32.xlu0 %v1750, 64
          %v1756 = vpop.permute.xlu0 %1755
          %v1759 = vadd.f32 %v1725, %v1754
          %v1760 = vadd.f32 %v1726, %v1756
          %vm1761 = vcmp.ge.s32.totalorder %v1496, 4294967293
          %vm1762 = vcmp.ge.s32.totalorder %v1497, 4294967293
          %vm1763 = vcmp.lt.s32.totalorder %v1496, 13
          %vm1764 = vcmp.lt.s32.totalorder %v1497, 13
          %vm1765 = vmand %vm1761, %vm1763
          %vm1766 = vmand %vm1762, %vm1764
          %v1767 = vsel %vm1765, 1, 0
          %v1768 = vsel %vm1766, 1, 0
          %v1769 = vcvt.s32.f32 %v1767
          %v1770 = vcvt.s32.f32 %v1768
          %v1771 = vld [vmem:[#allocation6 + $0x8] sm:$0x1]
          %v1772 = vlaneseq
          %v1773 = vshrl.u32 %v1772, 7
          %v1774 = vsub.s32 0, %v1773
          %v1775 = vrot.slane %v1771, %v1774
          %v1776 = vmul.f32 %v1501, %v1775
          %v1777 = vmul.f32 %v1502, %v1775
          %v1778 = vmul.f32 %v1776, %v1769
          %v1779 = vmul.f32 %v1777, %v1770
          %1782 = vrot.lane.b32.xlu0 %v1778, 64
          %v1783 = vpop.permute.xlu0 %1782
          %1784 = vrot.lane.b32.xlu0 %v1779, 64
          %v1785 = vpop.permute.xlu0 %1784
          %v1788 = vadd.f32 %v1759, %v1783
          %v1789 = vadd.f32 %v1760, %v1785
          %vm1790 = vcmp.ge.s32.totalorder %v1496, 4294967292
          %vm1791 = vcmp.ge.s32.totalorder %v1497, 4294967292
          %vm1792 = vcmp.lt.s32.totalorder %v1496, 12
          %vm1793 = vcmp.lt.s32.totalorder %v1497, 12
          %vm1794 = vmand %vm1790, %vm1792
          %vm1795 = vmand %vm1791, %vm1793
          %v1796 = vsel %vm1794, 1, 0
          %v1797 = vsel %vm1795, 1, 0
          %v1798 = vcvt.s32.f32 %v1796
          %v1799 = vcvt.s32.f32 %v1797
          %v1800 = vld [vmem:[#allocation6 + $0x9] sm:$0x1]
          %v1801 = vlaneseq
          %v1802 = vshrl.u32 %v1801, 7
          %v1803 = vsub.s32 0, %v1802
          %v1804 = vrot.slane %v1800, %v1803
          %v1805 = vmul.f32 %v1535, %v1804
          %v1806 = vmul.f32 %v1536, %v1804
          %v1807 = vmul.f32 %v1805, %v1798
          %v1808 = vmul.f32 %v1806, %v1799
          %1811 = vrot.lane.b32.xlu0 %v1807, 64
          %v1812 = vpop.permute.xlu0 %1811
          %1813 = vrot.lane.b32.xlu0 %v1808, 64
          %v1814 = vpop.permute.xlu0 %1813
          %v1817 = vadd.f32 %v1788, %v1812
          %v1818 = vadd.f32 %v1789, %v1814
          %vm1819 = vcmp.ge.s32.totalorder %v1496, 4294967291
          %vm1820 = vcmp.ge.s32.totalorder %v1497, 4294967291
          %vm1821 = vcmp.lt.s32.totalorder %v1496, 11
          %vm1822 = vcmp.lt.s32.totalorder %v1497, 11
          %vm1823 = vmand %vm1819, %vm1821
          %vm1824 = vmand %vm1820, %vm1822
          %v1825 = vsel %vm1823, 1, 0
          %v1826 = vsel %vm1824, 1, 0
          %v1827 = vcvt.s32.f32 %v1825
          %v1828 = vcvt.s32.f32 %v1826
          %v1829 = vld [vmem:[#allocation6 + $0xa] sm:$0x1]
          %v1830 = vlaneseq
          %v1831 = vshrl.u32 %v1830, 7
          %v1832 = vsub.s32 0, %v1831
          %v1833 = vrot.slane %v1829, %v1832
          %v1834 = vmul.f32 %v1569, %v1833
          %v1835 = vmul.f32 %v1570, %v1833
          %v1836 = vmul.f32 %v1834, %v1827
          %v1837 = vmul.f32 %v1835, %v1828
          %1840 = vrot.lane.b32.xlu0 %v1836, 64
          %v1841 = vpop.permute.xlu0 %1840
          %1842 = vrot.lane.b32.xlu0 %v1837, 64
          %v1843 = vpop.permute.xlu0 %1842
          %v1846 = vadd.f32 %v1817, %v1841
          %v1847 = vadd.f32 %v1818, %v1843
          %v1848 = vmul.f32 %v1846, %v467
          %v1849 = vmul.f32 %v1847, %v472
          %1852 = vrot.lane.b32.xlu0 %v1848, 64
          %v1853 = vpop.permute.xlu0 %1852
          %1854 = vrot.lane.b32.xlu0 %v1849, 64
          %v1855 = vpop.permute.xlu0 %1854
          %1858 = vst.msk [vmem:[#allocation5] sm:$0xff] %vm419, %v1853
          %1859 = vst.msk [vmem:[#allocation5 + $0x8] sm:$0xff] %vm419, %v1855
        $region64: #{tpu_custom_call.1} parent=51 // pred_fallthru
          _
        %s1860 = smul.u32 %s29, 8
        %s1861 = sshra.s32 %s1860, 3
        %s1862 = sand.u32 %s1860, 7
        %s1863 = smul.addr %s1861, 4
        %s1864 = scalar_lea.vmem [#allocation2], %s1863
        %v1865 = vld [vmem:[%s1864] sm:$0xf]
        %v1866 = vld [vmem:[%s1864 + $0x8] sm:$0xf]
        %v1867 = vld [vmem:[%s1864 + $0x10] sm:$0xf]
        %v1868 = vld [vmem:[%s1864 + $0x18] sm:$0xf]
        %v1869 = vld [vmem:[#allocation3] sm:$0xf]
        %v1870 = vld [vmem:[#allocation3 + $0x4] sm:$0xf]
        %v1871 = vld [vmem:[#allocation3 + $0x8] sm:$0xf]
        %v1872 = vld [vmem:[#allocation3 + $0xc] sm:$0xf]
        %v1873 = vld [vmem:[#allocation3 + $0x10] sm:$0xf]
        %v1874 = vld [vmem:[#allocation3 + $0x14] sm:$0xf]
        %v1875 = vld [vmem:[#allocation3 + $0x18] sm:$0xf]
        %v1876 = vld [vmem:[#allocation3 + $0x1c] sm:$0xf]
        %v1877 = vld [vmem:[%s381] sm:$0x1]
        %v1879 = vlaneseq
        %v1880 = vshrl.u32 %v1879, 7
        %v1881 = vsub.s32 0, %v1880
        %v1882 = vrot.slane %v1877, %v1881
        %v1886 = vunpack.c.l.b16 %v1869
        %v1887 = vunpack.c.l.b16 %v1870
        %v1888 = vpack.c.b16 %v1887, %v1886
        %vm1889 = vcmask 64512
        %v1891 = vsel %vm1889, %v1865, 0
        %v1894 = vsel %vm1889, %v1888, 0
        %1896 = vmatprep.subr.bf16.mxu0 0
        %1897 = vmatpush1.bf16.xpose.msra.mxu0 0
        %1898 = vmatprep.subr.bf16.mxu0 0
        %1899 = vmatpush1.bf16.xpose.msra.mxu0 0
        %1900 = vmatprep.subr.bf16.mxu0 0
        %1901 = vmatpush1.bf16.xpose.msra.mxu0 0
        %1902 = vmatprep.subr.bf16.mxu0 0
        %1903 = vmatpush1.bf16.xpose.msra.mxu0 0
        %1904 = vmatprep.subr.bf16.mxu0 0
        %1905 = vmatpush1.bf16.xpose.msra.mxu0 0
        %1906 = vmatprep.subr.bf16.mxu0 0
        %1907 = vmatpush1.bf16.xpose.msra.mxu0 0
        %1908 = vmatprep.subr.bf16.mxu0 0
        %1909 = vmatpush1.bf16.xpose.msra.mxu0 0
        %1910 = vmatprep.subr.bf16.mxu0 0
        %1911 = vmatpush1.bf16.xpose.msra.mxu0 %v1894
        %1912 = vmatprep.subr.bf16.mxu0 0
        %1913 = vmatpush2.bf16.xpose.msra.mxu0 0
        %1914 = vmatprep.subr.bf16.mxu0 0
        %1915 = vmatpush2.bf16.xpose.msra.mxu0 0
        %1916 = vmatprep.subr.bf16.mxu0 0
        %1917 = vmatpush2.bf16.xpose.msra.mxu0 0
        %1918 = vmatprep.subr.bf16.mxu0 0
        %1919 = vmatpush2.bf16.xpose.msra.mxu0 0
        %1920 = vmatprep.subr.bf16.mxu0 0
        %1921 = vmatpush2.bf16.xpose.msra.mxu0 0
        %1922 = vmatprep.subr.bf16.mxu0 0
        %1923 = vmatpush2.bf16.xpose.msra.mxu0 0
        %1924 = vmatprep.subr.bf16.mxu0 0
        %1925 = vmatpush2.bf16.xpose.msra.mxu0 0
        %1926 = vmatprep.subr.bf16.mxu0 0
        %1927 = vmatpush2.bf16.xpose.msra.mxu0 0
        %1928 = vmatprep.mubr.bf16.mxu0 0
        %1929 = vmatmul.mubr.bf16.gmra.mxu0 %v1891
        %v1930 = vpop.f32.mrf.mxu0
        %v1931 = vadd.f32 %v1882, %v1930
        %v1932 = vpop.f32.mrf.mxu0
        %v1933 = vpop.f32.mrf.mxu0
        %v1934 = vpop.f32.mrf.mxu0
        %1935 = vdwg.mxu0
        %v1938 = vunpack.c.l.b16 %v1871
        %v1939 = vunpack.c.l.b16 %v1872
        %v1940 = vpack.c.b16 %v1939, %v1938
        %v1942 = vsel %vm1889, %v1866, 0
        %v1945 = vsel %vm1889, %v1940, 0
        %1947 = vmatprep.subr.bf16.mxu0 0
        %1948 = vmatpush1.bf16.xpose.msra.mxu0 0
        %1949 = vmatprep.subr.bf16.mxu0 0
        %1950 = vmatpush1.bf16.xpose.msra.mxu0 0
        %1951 = vmatprep.subr.bf16.mxu0 0
        %1952 = vmatpush1.bf16.xpose.msra.mxu0 0
        %1953 = vmatprep.subr.bf16.mxu0 0
        %1954 = vmatpush1.bf16.xpose.msra.mxu0 0
        %1955 = vmatprep.subr.bf16.mxu0 0
        %1956 = vmatpush1.bf16.xpose.msra.mxu0 0
        %1957 = vmatprep.subr.bf16.mxu0 0
        %1958 = vmatpush1.bf16.xpose.msra.mxu0 0
        %1959 = vmatprep.subr.bf16.mxu0 0
        %1960 = vmatpush1.bf16.xpose.msra.mxu0 0
        %1961 = vmatprep.subr.bf16.mxu0 0
        %1962 = vmatpush1.bf16.xpose.msra.mxu0 %v1945
        %1963 = vmatprep.subr.bf16.mxu0 0
        %1964 = vmatpush2.bf16.xpose.msra.mxu0 0
        %1965 = vmatprep.subr.bf16.mxu0 0
        %1966 = vmatpush2.bf16.xpose.msra.mxu0 0
        %1967 = vmatprep.subr.bf16.mxu0 0
        %1968 = vmatpush2.bf16.xpose.msra.mxu0 0
        %1969 = vmatprep.subr.bf16.mxu0 0
        %1970 = vmatpush2.bf16.xpose.msra.mxu0 0
        %1971 = vmatprep.subr.bf16.mxu0 0
        %1972 = vmatpush2.bf16.xpose.msra.mxu0 0
        %1973 = vmatprep.subr.bf16.mxu0 0
        %1974 = vmatpush2.bf16.xpose.msra.mxu0 0
        %1975 = vmatprep.subr.bf16.mxu0 0
        %1976 = vmatpush2.bf16.xpose.msra.mxu0 0
        %1977 = vmatprep.subr.bf16.mxu0 0
        %1978 = vmatpush2.bf16.xpose.msra.mxu0 0
        %1979 = vmatprep.mubr.bf16.mxu0 0
        %1980 = vmatmul.mubr.bf16.gmra.mxu0 %v1942
        %v1981 = vpop.f32.mrf.mxu0
        %v1982 = vadd.f32 %v1882, %v1981
        %v1983 = vpop.f32.mrf.mxu0
        %v1984 = vpop.f32.mrf.mxu0
        %v1985 = vpop.f32.mrf.mxu0
        %1986 = vdwg.mxu0
        %v1989 = vunpack.c.l.b16 %v1873
        %v1990 = vunpack.c.l.b16 %v1874
        %v1991 = vpack.c.b16 %v1990, %v1989
        %v1993 = vsel %vm1889, %v1867, 0
        %v1996 = vsel %vm1889, %v1991, 0
        %1998 = vmatprep.subr.bf16.mxu0 0
        %1999 = vmatpush1.bf16.xpose.msra.mxu0 0
        %2000 = vmatprep.subr.bf16.mxu0 0
        %2001 = vmatpush1.bf16.xpose.msra.mxu0 0
        %2002 = vmatprep.subr.bf16.mxu0 0
        %2003 = vmatpush1.bf16.xpose.msra.mxu0 0
        %2004 = vmatprep.subr.bf16.mxu0 0
        %2005 = vmatpush1.bf16.xpose.msra.mxu0 0
        %2006 = vmatprep.subr.bf16.mxu0 0
        %2007 = vmatpush1.bf16.xpose.msra.mxu0 0
        %2008 = vmatprep.subr.bf16.mxu0 0
        %2009 = vmatpush1.bf16.xpose.msra.mxu0 0
        %2010 = vmatprep.subr.bf16.mxu0 0
        %2011 = vmatpush1.bf16.xpose.msra.mxu0 0
        %2012 = vmatprep.subr.bf16.mxu0 0
        %2013 = vmatpush1.bf16.xpose.msra.mxu0 %v1996
        %2014 = vmatprep.subr.bf16.mxu0 0
        %2015 = vmatpush2.bf16.xpose.msra.mxu0 0
        %2016 = vmatprep.subr.bf16.mxu0 0
        %2017 = vmatpush2.bf16.xpose.msra.mxu0 0
        %2018 = vmatprep.subr.bf16.mxu0 0
        %2019 = vmatpush2.bf16.xpose.msra.mxu0 0
        %2020 = vmatprep.subr.bf16.mxu0 0
        %2021 = vmatpush2.bf16.xpose.msra.mxu0 0
        %2022 = vmatprep.subr.bf16.mxu0 0
        %2023 = vmatpush2.bf16.xpose.msra.mxu0 0
        %2024 = vmatprep.subr.bf16.mxu0 0
        %2025 = vmatpush2.bf16.xpose.msra.mxu0 0
        %2026 = vmatprep.subr.bf16.mxu0 0
        %2027 = vmatpush2.bf16.xpose.msra.mxu0 0
        %2028 = vmatprep.subr.bf16.mxu0 0
        %2029 = vmatpush2.bf16.xpose.msra.mxu0 0
        %2030 = vmatprep.mubr.bf16.mxu0 0
        %2031 = vmatmul.mubr.bf16.gmra.mxu0 %v1993
        %v2032 = vpop.f32.mrf.mxu0
        %v2033 = vadd.f32 %v1882, %v2032
        %v2034 = vpop.f32.mrf.mxu0
        %v2035 = vpop.f32.mrf.mxu0
        %v2036 = vpop.f32.mrf.mxu0
        %2037 = vdwg.mxu0
        %v2040 = vunpack.c.l.b16 %v1875
        %v2041 = vunpack.c.l.b16 %v1876
        %v2042 = vpack.c.b16 %v2041, %v2040
        %v2044 = vsel %vm1889, %v1868, 0
        %v2047 = vsel %vm1889, %v2042, 0
        %2049 = vmatprep.subr.bf16.mxu0 0
        %2050 = vmatpush1.bf16.xpose.msra.mxu0 0
        %2051 = vmatprep.subr.bf16.mxu0 0
        %2052 = vmatpush1.bf16.xpose.msra.mxu0 0
        %2053 = vmatprep.subr.bf16.mxu0 0
        %2054 = vmatpush1.bf16.xpose.msra.mxu0 0
        %2055 = vmatprep.subr.bf16.mxu0 0
        %2056 = vmatpush1.bf16.xpose.msra.mxu0 0
        %2057 = vmatprep.subr.bf16.mxu0 0
        %2058 = vmatpush1.bf16.xpose.msra.mxu0 0
        %2059 = vmatprep.subr.bf16.mxu0 0
        %2060 = vmatpush1.bf16.xpose.msra.mxu0 0
        %2061 = vmatprep.subr.bf16.mxu0 0
        %2062 = vmatpush1.bf16.xpose.msra.mxu0 0
        %2063 = vmatprep.subr.bf16.mxu0 0
        %2064 = vmatpush1.bf16.xpose.msra.mxu0 %v2047
        %2065 = vmatprep.subr.bf16.mxu0 0
        %2066 = vmatpush2.bf16.xpose.msra.mxu0 0
        %2067 = vmatprep.subr.bf16.mxu0 0
        %2068 = vmatpush2.bf16.xpose.msra.mxu0 0
        %2069 = vmatprep.subr.bf16.mxu0 0
        %2070 = vmatpush2.bf16.xpose.msra.mxu0 0
        %2071 = vmatprep.subr.bf16.mxu0 0
        %2072 = vmatpush2.bf16.xpose.msra.mxu0 0
        %2073 = vmatprep.subr.bf16.mxu0 0
        %2074 = vmatpush2.bf16.xpose.msra.mxu0 0
        %2075 = vmatprep.subr.bf16.mxu0 0
        %2076 = vmatpush2.bf16.xpose.msra.mxu0 0
        %2077 = vmatprep.subr.bf16.mxu0 0
        %2078 = vmatpush2.bf16.xpose.msra.mxu0 0
        %2079 = vmatprep.subr.bf16.mxu0 0
        %2080 = vmatpush2.bf16.xpose.msra.mxu0 0
        %2081 = vmatprep.mubr.bf16.mxu0 0
        %2082 = vmatmul.mubr.bf16.gmra.mxu0 %v2044
        %v2083 = vpop.f32.mrf.mxu0
        %v2084 = vadd.f32 %v1882, %v2083
        %v2085 = vpop.f32.mrf.mxu0
        %v2086 = vpop.f32.mrf.mxu0
        %v2087 = vpop.f32.mrf.mxu0
        %2088 = vdwg.mxu0
        %vm2089 = vcmask 130048
        %v2090 = vsel %vm2089, %v1931, -inf
        %2091 = vmax.xlane.f32.xlu0 %v2090
        %v2092 = vpop.xlane.xlu0 %2091
        %v2093 = vsel %vm2089, %v1982, -inf
        %2094 = vmax.xlane.f32.xlu0 %v2093
        %v2095 = vpop.xlane.xlu0 %2094
        %v2096 = vsel %vm2089, %v2033, -inf
        %2097 = vmax.xlane.f32.xlu0 %v2096
        %v2098 = vpop.xlane.xlu0 %2097
        %v2099 = vsel %vm2089, %v2084, -inf
        %2100 = vmax.xlane.f32.xlu0 %v2099
        %v2101 = vpop.xlane.xlu0 %2100
        %v2102 = vsub.f32 %v1931, %v2092
        %v2103 = vsub.f32 %v1982, %v2095
        %v2104 = vsub.f32 %v2033, %v2098
        %v2105 = vsub.f32 %v2084, %v2101
        %v2106 = vmul.f32 %v2102, 1.442695
        %v2107 = vpow.pop %v2106
        %v2108 = vmul.f32 %v2103, 1.442695
        %v2109 = vpow.pop %v2108
        %v2110 = vmul.f32 %v2104, 1.442695
        %v2111 = vpow.pop %v2110
        %v2112 = vmul.f32 %v2105, 1.442695
        %v2113 = vpow.pop %v2112
        %v2114 = vsel %vm2089, %v2107, 0.0
        %2115 = vadd.xlane.f32.xlu0 %v2114
        %v2116 = vpop.xlane.xlu0 %2115
        %v2117 = vsel %vm2089, %v2109, 0.0
        %2118 = vadd.xlane.f32.xlu0 %v2117
        %v2119 = vpop.xlane.xlu0 %2118
        %v2120 = vsel %vm2089, %v2111, 0.0
        %2121 = vadd.xlane.f32.xlu0 %v2120
        %v2122 = vpop.xlane.xlu0 %2121
        %v2123 = vsel %vm2089, %v2113, 0.0
        %2124 = vadd.xlane.f32.xlu0 %v2123
        %v2125 = vpop.xlane.xlu0 %2124
        %v2126 = vrcp.pop %v2116
        %v2127 = vrcp.pop %v2119
        %v2128 = vrcp.pop %v2122
        %v2129 = vrcp.pop %v2125
        %v2130 = vmul.f32 %v2107, %v2126
        %v2131 = vmul.f32 %v2109, %v2127
        %v2132 = vmul.f32 %v2111, %v2128
        %v2133 = vmul.f32 %v2113, %v2129
        %v2134 = vpack.c.bf16 %v2130, %v2130
        %v2135 = vpack.c.bf16 %v2131, %v2131
        %v2136 = vpack.c.bf16 %v2132, %v2132
        %v2137 = vpack.c.bf16 %v2133, %v2133
        %v2138 = vld [vmem:[#allocation4] sm:$0xf]
        %v2139 = vld [vmem:[#allocation4 + $0x4] sm:$0xf]
        %v2140 = vld [vmem:[#allocation4 + $0x8] sm:$0xf]
        %v2141 = vld [vmem:[#allocation4 + $0xc] sm:$0xf]
        %v2142 = vld [vmem:[#allocation4 + $0x10] sm:$0xf]
        %v2143 = vld [vmem:[#allocation4 + $0x14] sm:$0xf]
        %v2144 = vld [vmem:[#allocation4 + $0x18] sm:$0xf]
        %v2145 = vld [vmem:[#allocation4 + $0x1c] sm:$0xf]
        %v2148 = vunpack.c.l.b16 %v2138
        %v2149 = vunpack.c.l.b16 %v2139
        %v2150 = vpack.c.b16 %v2149, %v2148
        %v2153 = vsel %vm2089, %v2134, 0
        %2155 = vmatprep.subr.bf16.mxu0 0
        %2156 = vmatpush1.bf16.msra.mxu0 0
        %2157 = vmatprep.subr.bf16.mxu0 0
        %2158 = vmatpush1.bf16.msra.mxu0 0
        %2159 = vmatprep.subr.bf16.mxu0 0
        %2160 = vmatpush1.bf16.msra.mxu0 0
        %2161 = vmatprep.subr.bf16.mxu0 0
        %2162 = vmatpush1.bf16.msra.mxu0 0
        %2163 = vmatprep.subr.bf16.mxu0 0
        %2164 = vmatpush1.bf16.msra.mxu0 0
        %2165 = vmatprep.subr.bf16.mxu0 0
        %2166 = vmatpush1.bf16.msra.mxu0 0
        %2167 = vmatprep.subr.bf16.mxu0 0
        %2168 = vmatpush1.bf16.msra.mxu0 0
        %2169 = vmatprep.subr.bf16.mxu0 0
        %2170 = vmatpush1.bf16.msra.mxu0 %v2150
        %2171 = vmatprep.subr.bf16.mxu0 0
        %2172 = vmatpush2.bf16.msra.mxu0 0
        %2173 = vmatprep.subr.bf16.mxu0 0
        %2174 = vmatpush2.bf16.msra.mxu0 0
        %2175 = vmatprep.subr.bf16.mxu0 0
        %2176 = vmatpush2.bf16.msra.mxu0 0
        %2177 = vmatprep.subr.bf16.mxu0 0
        %2178 = vmatpush2.bf16.msra.mxu0 0
        %2179 = vmatprep.subr.bf16.mxu0 0
        %2180 = vmatpush2.bf16.msra.mxu0 0
        %2181 = vmatprep.subr.bf16.mxu0 0
        %2182 = vmatpush2.bf16.msra.mxu0 0
        %2183 = vmatprep.subr.bf16.mxu0 0
        %2184 = vmatpush2.bf16.msra.mxu0 0
        %2185 = vmatprep.subr.bf16.mxu0 0
        %2186 = vmatpush2.bf16.msra.mxu0 0
        %2187 = vmatprep.mubr.bf16.mxu0 0
        %2188 = vmatmul.mubr.bf16.gmra.mxu0 %v2153
        %v2189 = vpop.f32.mrf.mxu0
        %v2190 = vadd.f32 0.0, %v2189
        %v2191 = vpop.f32.mrf.mxu0
        %v2192 = vpop.f32.mrf.mxu0
        %v2193 = vpop.f32.mrf.mxu0
        %2194 = vdwg.mxu0
        %v2197 = vunpack.c.l.b16 %v2140
        %v2198 = vunpack.c.l.b16 %v2141
        %v2199 = vpack.c.b16 %v2198, %v2197
        %v2202 = vsel %vm2089, %v2135, 0
        %2204 = vmatprep.subr.bf16.mxu0 0
        %2205 = vmatpush1.bf16.msra.mxu0 0
        %2206 = vmatprep.subr.bf16.mxu0 0
        %2207 = vmatpush1.bf16.msra.mxu0 0
        %2208 = vmatprep.subr.bf16.mxu0 0
        %2209 = vmatpush1.bf16.msra.mxu0 0
        %2210 = vmatprep.subr.bf16.mxu0 0
        %2211 = vmatpush1.bf16.msra.mxu0 0
        %2212 = vmatprep.subr.bf16.mxu0 0
        %2213 = vmatpush1.bf16.msra.mxu0 0
        %2214 = vmatprep.subr.bf16.mxu0 0
        %2215 = vmatpush1.bf16.msra.mxu0 0
        %2216 = vmatprep.subr.bf16.mxu0 0
        %2217 = vmatpush1.bf16.msra.mxu0 0
        %2218 = vmatprep.subr.bf16.mxu0 0
        %2219 = vmatpush1.bf16.msra.mxu0 %v2199
        %2220 = vmatprep.subr.bf16.mxu0 0
        %2221 = vmatpush2.bf16.msra.mxu0 0
        %2222 = vmatprep.subr.bf16.mxu0 0
        %2223 = vmatpush2.bf16.msra.mxu0 0
        %2224 = vmatprep.subr.bf16.mxu0 0
        %2225 = vmatpush2.bf16.msra.mxu0 0
        %2226 = vmatprep.subr.bf16.mxu0 0
        %2227 = vmatpush2.bf16.msra.mxu0 0
        %2228 = vmatprep.subr.bf16.mxu0 0
        %2229 = vmatpush2.bf16.msra.mxu0 0
        %2230 = vmatprep.subr.bf16.mxu0 0
        %2231 = vmatpush2.bf16.msra.mxu0 0
        %2232 = vmatprep.subr.bf16.mxu0 0
        %2233 = vmatpush2.bf16.msra.mxu0 0
        %2234 = vmatprep.subr.bf16.mxu0 0
        %2235 = vmatpush2.bf16.msra.mxu0 0
        %2236 = vmatprep.mubr.bf16.mxu0 0
        %2237 = vmatmul.mubr.bf16.gmra.mxu0 %v2202
        %v2238 = vpop.f32.mrf.mxu0
        %v2239 = vadd.f32 0.0, %v2238
        %v2240 = vpop.f32.mrf.mxu0
        %v2241 = vpop.f32.mrf.mxu0
        %v2242 = vpop.f32.mrf.mxu0
        %2243 = vdwg.mxu0
        %v2246 = vunpack.c.l.b16 %v2142
        %v2247 = vunpack.c.l.b16 %v2143
        %v2248 = vpack.c.b16 %v2247, %v2246
        %v2251 = vsel %vm2089, %v2136, 0
        %2253 = vmatprep.subr.bf16.mxu0 0
        %2254 = vmatpush1.bf16.msra.mxu0 0
        %2255 = vmatprep.subr.bf16.mxu0 0
        %2256 = vmatpush1.bf16.msra.mxu0 0
        %2257 = vmatprep.subr.bf16.mxu0 0
        %2258 = vmatpush1.bf16.msra.mxu0 0
        %2259 = vmatprep.subr.bf16.mxu0 0
        %2260 = vmatpush1.bf16.msra.mxu0 0
        %2261 = vmatprep.subr.bf16.mxu0 0
        %2262 = vmatpush1.bf16.msra.mxu0 0
        %2263 = vmatprep.subr.bf16.mxu0 0
        %2264 = vmatpush1.bf16.msra.mxu0 0
        %2265 = vmatprep.subr.bf16.mxu0 0
        %2266 = vmatpush1.bf16.msra.mxu0 0
        %2267 = vmatprep.subr.bf16.mxu0 0
        %2268 = vmatpush1.bf16.msra.mxu0 %v2248
        %2269 = vmatprep.subr.bf16.mxu0 0
        %2270 = vmatpush2.bf16.msra.mxu0 0
        %2271 = vmatprep.subr.bf16.mxu0 0
        %2272 = vmatpush2.bf16.msra.mxu0 0
        %2273 = vmatprep.subr.bf16.mxu0 0
        %2274 = vmatpush2.bf16.msra.mxu0 0
        %2275 = vmatprep.subr.bf16.mxu0 0
        %2276 = vmatpush2.bf16.msra.mxu0 0
        %2277 = vmatprep.subr.bf16.mxu0 0
        %2278 = vmatpush2.bf16.msra.mxu0 0
        %2279 = vmatprep.subr.bf16.mxu0 0
        %2280 = vmatpush2.bf16.msra.mxu0 0
        %2281 = vmatprep.subr.bf16.mxu0 0
        %2282 = vmatpush2.bf16.msra.mxu0 0
        %2283 = vmatprep.subr.bf16.mxu0 0
        %2284 = vmatpush2.bf16.msra.mxu0 0
        %2285 = vmatprep.mubr.bf16.mxu0 0
        %2286 = vmatmul.mubr.bf16.gmra.mxu0 %v2251
        %v2287 = vpop.f32.mrf.mxu0
        %v2288 = vadd.f32 0.0, %v2287
        %v2289 = vpop.f32.mrf.mxu0
        %v2290 = vpop.f32.mrf.mxu0
        %v2291 = vpop.f32.mrf.mxu0
        %2292 = vdwg.mxu0
        %v2295 = vunpack.c.l.b16 %v2144
        %v2296 = vunpack.c.l.b16 %v2145
        %v2297 = vpack.c.b16 %v2296, %v2295
        %v2300 = vsel %vm2089, %v2137, 0
        %2302 = vmatprep.subr.bf16.mxu0 0
        %2303 = vmatpush1.bf16.msra.mxu0 0
        %2304 = vmatprep.subr.bf16.mxu0 0
        %2305 = vmatpush1.bf16.msra.mxu0 0
        %2306 = vmatprep.subr.bf16.mxu0 0
        %2307 = vmatpush1.bf16.msra.mxu0 0
        %2308 = vmatprep.subr.bf16.mxu0 0
        %2309 = vmatpush1.bf16.msra.mxu0 0
        %2310 = vmatprep.subr.bf16.mxu0 0
        %2311 = vmatpush1.bf16.msra.mxu0 0
        %2312 = vmatprep.subr.bf16.mxu0 0
        %2313 = vmatpush1.bf16.msra.mxu0 0
        %2314 = vmatprep.subr.bf16.mxu0 0
        %2315 = vmatpush1.bf16.msra.mxu0 0
        %2316 = vmatprep.subr.bf16.mxu0 0
        %2317 = vmatpush1.bf16.msra.mxu0 %v2297
        %2318 = vmatprep.subr.bf16.mxu0 0
        %2319 = vmatpush2.bf16.msra.mxu0 0
        %2320 = vmatprep.subr.bf16.mxu0 0
        %2321 = vmatpush2.bf16.msra.mxu0 0
        %2322 = vmatprep.subr.bf16.mxu0 0
        %2323 = vmatpush2.bf16.msra.mxu0 0
        %2324 = vmatprep.subr.bf16.mxu0 0
        %2325 = vmatpush2.bf16.msra.mxu0 0
        %2326 = vmatprep.subr.bf16.mxu0 0
        %2327 = vmatpush2.bf16.msra.mxu0 0
        %2328 = vmatprep.subr.bf16.mxu0 0
        %2329 = vmatpush2.bf16.msra.mxu0 0
        %2330 = vmatprep.subr.bf16.mxu0 0
        %2331 = vmatpush2.bf16.msra.mxu0 0
        %2332 = vmatprep.subr.bf16.mxu0 0
        %2333 = vmatpush2.bf16.msra.mxu0 0
        %2334 = vmatprep.mubr.bf16.mxu0 0
        %2335 = vmatmul.mubr.bf16.gmra.mxu0 %v2300
        %v2336 = vpop.f32.mrf.mxu0
        %v2337 = vadd.f32 0.0, %v2336
        %v2338 = vpop.f32.mrf.mxu0
        %v2339 = vpop.f32.mrf.mxu0
        %v2340 = vpop.f32.mrf.mxu0
        %2341 = vdwg.mxu0
        %v2342 = vcombine.low %v2190, %v2288
        %v2343 = vcombine.high %v2190, %v2288
        %v2345 = vunpack.c.l.s4 1983009808
        %v2346 = vunpack.c.0.s8 %v2345
        %v2347 = vlaneseq
        %v2348 = vshrl.u32 %v2347, 7
        %v2349 = vsub.s32 %v2346, %v2348
        %v2350 = vrot.slane %v2342, %v2349
        %v2352 = vunpack.c.l.s4 1983009808
        %v2353 = vunpack.c.0.s8 %v2352
        %v2354 = vlaneseq
        %v2355 = vshrl.u32 %v2354, 7
        %v2356 = vsub.s32 %v2353, %v2355
        %v2357 = vrot.slane %v2343, %v2356
        %v2358 = vcombine.low %v2239, %v2337
        %v2359 = vcombine.high %v2239, %v2337
        %v2361 = vunpack.c.l.s4 1983009808
        %v2362 = vunpack.c.0.s8 %v2361
        %v2363 = vlaneseq
        %v2364 = vshrl.u32 %v2363, 7
        %v2365 = vsub.s32 %v2362, %v2364
        %v2366 = vrot.slane %v2358, %v2365
        %v2368 = vunpack.c.l.s4 1983009808
        %v2369 = vunpack.c.0.s8 %v2368
        %v2370 = vlaneseq
        %v2371 = vshrl.u32 %v2370, 7
        %v2372 = vsub.s32 %v2369, %v2371
        %v2373 = vrot.slane %v2359, %v2372
        %v2374 = vcombine.low %v2350, %v2366
        %v2375 = vcombine.high %v2350, %v2366
        %v2377 = vunpack.c.l.s4 1934713408
        %v2378 = vunpack.c.0.s8 %v2377
        %v2379 = vlaneseq
        %v2380 = vshrl.u32 %v2379, 7
        %v2381 = vsub.s32 %v2378, %v2380
        %v2382 = vrot.slane %v2374, %v2381
        %v2384 = vunpack.c.l.s4 1934713408
        %v2385 = vunpack.c.0.s8 %v2384
        %v2386 = vlaneseq
        %v2387 = vshrl.u32 %v2386, 7
        %v2388 = vsub.s32 %v2385, %v2387
        %v2389 = vrot.slane %v2375, %v2388
        %v2390 = vcombine.low %v2357, %v2373
        %v2391 = vcombine.high %v2357, %v2373
        %v2393 = vunpack.c.l.s4 1934713408
        %v2394 = vunpack.c.0.s8 %v2393
        %v2395 = vlaneseq
        %v2396 = vshrl.u32 %v2395, 7
        %v2397 = vsub.s32 %v2394, %v2396
        %v2398 = vrot.slane %v2390, %v2397
        %v2400 = vunpack.c.l.s4 1934713408
        %v2401 = vunpack.c.0.s8 %v2400
        %v2402 = vlaneseq
        %v2403 = vshrl.u32 %v2402, 7
        %v2404 = vsub.s32 %v2401, %v2403
        %v2405 = vrot.slane %v2391, %v2404
        %v2406 = vcombine.high %v2382, 0.0
        %v2407 = vcombine.high %v2389, 0.0
        %v2408 = vcombine.high %v2398, 0.0
        %v2409 = vcombine.high %v2405, 0.0
        %v2410 = vcombine.low %v2382, %v2389
        %v2412 = vunpack.c.l.s4 1983009808
        %v2413 = vunpack.c.0.s8 %v2412
        %v2414 = vlaneseq
        %v2415 = vshrl.u32 %v2414, 7
        %v2416 = vsub.s32 %v2413, %v2415
        %v2417 = vrot.slane %v2410, %v2416
        %v2418 = vcombine.low %v2406, %v2407
        %v2420 = vunpack.c.l.s4 1983009808
        %v2421 = vunpack.c.0.s8 %v2420
        %v2422 = vlaneseq
        %v2423 = vshrl.u32 %v2422, 7
        %v2424 = vsub.s32 %v2421, %v2423
        %v2425 = vrot.slane %v2418, %v2424
        %v2426 = vcombine.low %v2398, %v2405
        %v2428 = vunpack.c.l.s4 1983009808
        %v2429 = vunpack.c.0.s8 %v2428
        %v2430 = vlaneseq
        %v2431 = vshrl.u32 %v2430, 7
        %v2432 = vsub.s32 %v2429, %v2431
        %v2433 = vrot.slane %v2426, %v2432
        %v2434 = vcombine.low %v2408, %v2409
        %v2436 = vunpack.c.l.s4 1983009808
        %v2437 = vunpack.c.0.s8 %v2436
        %v2438 = vlaneseq
        %v2439 = vshrl.u32 %v2438, 7
        %v2440 = vsub.s32 %v2437, %v2439
        %v2441 = vrot.slane %v2434, %v2440
        %v2442 = vcombine.low %v2417, %v2425
        %v2443 = vcombine.high %v2417, %v2425
        %v2445 = vunpack.c.l.s4 1934713408
        %v2446 = vunpack.c.0.s8 %v2445
        %v2447 = vlaneseq
        %v2448 = vshrl.u32 %v2447, 7
        %v2449 = vsub.s32 %v2446, %v2448
        %v2450 = vrot.slane %v2442, %v2449
        %v2452 = vunpack.c.l.s4 1934713408
        %v2453 = vunpack.c.0.s8 %v2452
        %v2454 = vlaneseq
        %v2455 = vshrl.u32 %v2454, 7
        %v2456 = vsub.s32 %v2453, %v2455
        %v2457 = vrot.slane %v2443, %v2456
        %v2458 = vcombine.low %v2433, %v2441
        %v2459 = vcombine.high %v2433, %v2441
        %v2461 = vunpack.c.l.s4 1934713408
        %v2462 = vunpack.c.0.s8 %v2461
        %v2463 = vlaneseq
        %v2464 = vshrl.u32 %v2463, 7
        %v2465 = vsub.s32 %v2462, %v2464
        %v2466 = vrot.slane %v2458, %v2465
        %v2468 = vunpack.c.l.s4 1934713408
        %v2469 = vunpack.c.0.s8 %v2468
        %v2470 = vlaneseq
        %v2471 = vshrl.u32 %v2470, 7
        %v2472 = vsub.s32 %v2469, %v2471
        %v2473 = vrot.slane %v2459, %v2472
        %v2474 = vcombine.low %v2450, %v2466
        %v2475 = vcombine.high %v2450, %v2466
        %v2476 = vcombine.low %v2457, %v2473
        %v2477 = vcombine.high %v2457, %v2473
        %2479 = vrot.lane.b32.xlu0 %v2475, 8
        %v2480 = vpop.permute.xlu0 %2479
        %2483 = vrot.lane.b32.xlu0 %v2476, 16
        %v2484 = vpop.permute.xlu0 %2483
        %2487 = vrot.lane.b32.xlu0 %v2477, 24
        %v2488 = vpop.permute.xlu0 %2487
        %v2490 = vsel %vm1889, %v2474, %v2480
        %v2491 = vsel %vm2089, %v2490, %v2484
        %vm2492 = vcmask 195584
        %v2493 = vsel %vm2492, %v2491, %v2488
        %v2494 = vpack.c.bf16 %v2493, %v2493
        %v2495 = vld [vmem:[#allocation9] sm:$0xf]
        %v2496 = vld [vmem:[#allocation9 + $0x4] sm:$0xf]
        %v2497 = vld [vmem:[#allocation9 + $0x8] sm:$0xf]
        %v2498 = vld [vmem:[#allocation9 + $0xc] sm:$0xf]
        %v2499 = vld [vmem:[%s7] sm:$0x1]
        %v2501 = vlaneseq
        %v2502 = vshrl.u32 %v2501, 7
        %v2503 = vsub.s32 0, %v2502
        %v2504 = vrot.slane %v2499, %v2503
        %v2510 = vunpack.c.l.b16 %v2495
        %v2511 = vunpack.c.l.b16 %v2496
        %v2512 = vunpack.c.l.b16 %v2497
        %v2513 = vunpack.c.l.b16 %v2498
        %v2514 = vpack.c.b16 %v2511, %v2510
        %v2515 = vpack.c.b16 %v2513, %v2512
        %vm2518 = vcmask 261120
        %v2520 = vsel %vm2518, %v2494, 0
        %2522 = vmatprep.subr.bf16.mxu0 0
        %2523 = vmatpush1.bf16.msra.mxu0 0
        %2524 = vmatprep.subr.bf16.mxu0 0
        %2525 = vmatpush1.bf16.msra.mxu0 0
        %2526 = vmatprep.subr.bf16.mxu0 0
        %2527 = vmatpush1.bf16.msra.mxu0 0
        %2528 = vmatprep.subr.bf16.mxu0 0
        %2529 = vmatpush1.bf16.msra.mxu0 0
        %2530 = vmatprep.subr.bf16.mxu0 0
        %2531 = vmatpush1.bf16.msra.mxu0 0
        %2532 = vmatprep.subr.bf16.mxu0 0
        %2533 = vmatpush1.bf16.msra.mxu0 0
        %2534 = vmatprep.subr.bf16.mxu0 0
        %2535 = vmatpush1.bf16.msra.mxu0 %v2515
        %2536 = vmatprep.subr.bf16.mxu0 0
        %2537 = vmatpush1.bf16.msra.mxu0 %v2514
        %2538 = vmatprep.subr.bf16.mxu0 0
        %2539 = vmatpush2.bf16.msra.mxu0 0
        %2540 = vmatprep.subr.bf16.mxu0 0
        %2541 = vmatpush2.bf16.msra.mxu0 0
        %2542 = vmatprep.subr.bf16.mxu0 0
        %2543 = vmatpush2.bf16.msra.mxu0 0
        %2544 = vmatprep.subr.bf16.mxu0 0
        %2545 = vmatpush2.bf16.msra.mxu0 0
        %2546 = vmatprep.subr.bf16.mxu0 0
        %2547 = vmatpush2.bf16.msra.mxu0 0
        %2548 = vmatprep.subr.bf16.mxu0 0
        %2549 = vmatpush2.bf16.msra.mxu0 0
        %2550 = vmatprep.subr.bf16.mxu0 0
        %2551 = vmatpush2.bf16.msra.mxu0 0
        %2552 = vmatprep.subr.bf16.mxu0 0
        %2553 = vmatpush2.bf16.msra.mxu0 0
        %2554 = vmatprep.mubr.bf16.mxu0 0
        %2555 = vmatmul.mubr.bf16.gmra.mxu0 %v2520
        %v2556 = vpop.f32.mrf.mxu0
        %v2557 = vadd.f32 %v2504, %v2556
        %v2558 = vpop.f32.mrf.mxu0
        %v2559 = vpop.f32.mrf.mxu0
        %v2560 = vpop.f32.mrf.mxu0
        %2561 = vdwg.mxu0
        %s2562 = scalar_lea.vmem [#allocation5], %s1860
        %v2563 = vld [vmem:[%s2562] sm:$0xff]
        %v2564 = vadd.f32 %v2557, %v2563
        %2565 = vst.msk [vmem:[%s368] sm:$0xff] %vm2518, %v2564
        %s2566 = sand.u32 %s229, 1
        %s2567 = scalar_lea.sflag [#allocation8], %s2566
        %s2568 = sand.u32 %s229, 1
        %s2569 = smul.addr %s2568, 8
        %s2570 = scalar_lea.vmem [#allocation11], %s2569
        // Predicated region
        $region65: #{tpu_custom_call.1} parent=51 // pred_check
          %p2571 = pneg %p239
        $region66: #{tpu_custom_call.1} parent=51 // pred_check_branch
          %2573 = sbr.rel (%p2571) target = $region68
        $region67: #{tpu_custom_call.1} parent=51 // pred_region
          %s2575 = ssub.s32 128, 128
          %2576 = vsyncadd %s2567, %s2575
          %s2577 = smul.addr %s28, 2
          %s2578 = sadd.s32 %s29, %s2577
          %s2579 = smul.addr %s2578, 128
          %s2580 = scalar_lea.hbm %s8, %s2579
          %s2582 = sshll.u32 %s2570, 4
          %s2583 = int_to_ptr.vmem [resolvable:$true] %s2582
          %2585 = dma.vmem_to_hbm [thread:$0]  %s2583, 128, %s2580, %s2567
        $region68: #{tpu_custom_call.1} parent=51 // pred_fallthru
          _
      $region52: #{tpu_custom_call.1} parent=5 // pred_fallthru
        _
      %p2586 = scmp.le.s32.totalorder 2, %s19
      // Predicated region
      $region69: #{tpu_custom_call.1} parent=5 // pred_check
        %p2587 = pneg %p2586
      $region70: #{tpu_custom_call.1} parent=5 // pred_check_branch
        %2589 = sbr.rel (%p2587) target = $region72
      $region71: #{tpu_custom_call.1} parent=5 // pred_region
        %s2590 = ssub.s32 %s19, 2
        // Predicated region
        $region73: #{tpu_custom_call.1} parent=71 // pred_check
          %p2591 = pneg %p245
        $region74: #{tpu_custom_call.1} parent=71 // pred_check_branch
          %2593 = sbr.rel (%p2591) target = $region76
        $region75: #{tpu_custom_call.1} parent=71 // pred_region
          %s2594 = sand.u32 %s230, 1
          %s2595 = scalar_lea.sflag [#allocation8], %s2594
          %s2596 = sand.u32 %s230, 1
          %s2597 = smul.addr %s2596, 8
          %s2598 = scalar_lea.vmem [#allocation11], %s2597
          %2599 = dma.done %s2595, 128
        $region76: #{tpu_custom_call.1} parent=71 // pred_fallthru
          _
      $region72: #{tpu_custom_call.1} parent=5 // pred_fallthru
        _
    $region6: #{tpu_custom_call.1} parent=1 // loop_footer
      %s23 = sadd.s32 1, %s19
    $region7: #{tpu_custom_call.1} parent=1 // loop_footer_branch
      %18 = sbr.rel target = $region3
    $region8: #{tpu_custom_call.1} parent=1 // loop_exit
      _
    %2600 = vsyncpa [#allocation7], 1
    %s2601 = scalar_lea.sflag [#allocation7], 1
    %2602 = vsyncpa %s2601, 1
    %2603 = vsyncpa [#allocation10], 1
    %2604 = vsyncpa [#allocation8], 1
    %s2605 = scalar_lea.sflag [#allocation8], 1
    %2606 = vsyncpa %s2605, 1

</llo_original>
